<compile_context>
chip_gen: v7x
topology: tpu7x:2x2x1
jax: 0.10.0
libtpu: 0.0.40
codegen_flags: <defaults>
</compile_context>

<pallas_src>
import functools

import jax
import jax.numpy as jnp
from jax.experimental import pallas as pl
from jax.experimental.pallas import tpu as pltpu

# ---------------- configuration (small, consistent with the module) ----------------
B = 2                # batch
CHANNELS = 4         # must be even
HALF = CHANNELS // 2
HIDDEN = 32          # hidden_channels
KERNEL_SIZE = 3
DILATION_RATE = 1
N_LAYERS = 4
T = 16               # time steps

# The folded-batch sublane roll + per-segment edge mask only replaces zero padding
# correctly while the largest temporal shift stays inside one length-T segment.
assert DILATION_RATE ** (N_LAYERS - 1) * (KERNEL_SIZE - 1) // 2 < T


# --------------------------------- Pallas kernel -----------------------------------
def coupling_kernel(x_ref, mask_ref,
                    wpre_ref, bpre_ref,
                    wgate_ref, bgate_ref,
                    wrs_ref, brs_ref,
                    wpost_ref, bpost_ref,
                    xout_ref, logdet_ref):
    rows = B * T
    H = HIDDEN

    # Folded batch: merging the leading (B, T) dims is a free view (T multiple of 8),
    # no per-segment concatenation of separate loads.
    x = x_ref[...].reshape(rows, CHANNELS)          # (rows, C)
    mask = mask_ref[...].reshape(rows, 1)           # (rows, 1)
    pos = jnp.concatenate(
        [jax.lax.broadcasted_iota(jnp.int32, (T, 1), 0)] * B, axis=0)   # time index per segment

    # --- `pre` 1x1 conv (contraction = HALF = 2) on the VPU: broadcast FMAs, no MXU pass.
    # TODO(synk): at production half_channels (~96), switch to a single MXU matmul.
    wpre = wpre_ref[...]                            # (HALF, H)
    h = bpre_ref[...]                               # (1, H) -> broadcasts up
    for c in range(HALF):
        h = h + x[:, c:c + 1] * wpre[c:c + 1, :]
    h = h * mask                                    # (rows, H), f32

    # Temporal shift = sublane roll + per-segment edge mask (replaces per-layer
    # zero-pad + concatenate).  result[t] = v[t - s] within each length-T segment.
    keep_cache = {}

    def shifted(v, s):
        if s == 0:
            return v
        if s not in keep_cache:
            keep = (pos >= s) if s > 0 else (pos < T + s)
            keep_cache[s] = keep.astype(jnp.float32)        # (rows, 1)
        return pltpu.roll(v, shift=s % rows, axis=0) * keep_cache[s]

    mm_dt = wgate_ref.dtype   # bf16 on the fast path (wrapper decides); f32 for verification

    # --- WaveNet encoder: gated dilated convs with residual + skip connections.
    out_acc = None
    for l in range(N_LAYERS):
        dil = DILATION_RATE ** l
        padw = dil * (KERNEL_SIZE - 1) // 2
        # Fused K-tap operand: (rows, K*H) lane concat -> one K*H-deep contraction.
        taps = jnp.concatenate(
            [shifted(h, padw - k * dil) for k in range(KERNEL_SIZE)], axis=1)
        # ONE fused gate matmul per layer; output lanes = [tanh-half | sigmoid-half].
        pre = (jnp.dot(taps.astype(mm_dt), wgate_ref[l],
                       preferred_element_type=jnp.float32) + bgate_ref[l])   # (rows, 2H) f32
        # Gated activation (dropout p=0 -> identity).  The sigmoid half is an in-vreg
        # lane slice; an XLU lane-roll of sigmoid(pre) is the equivalent alternative.
        acts = jnp.tanh(pre[:, :H]) * jax.nn.sigmoid(pre[:, H:])             # (rows, H) f32
        # ONE fused res/skip matmul; output lanes = [res | skip] (PyTorch ordering).
        rs = (jnp.dot(acts.astype(mm_dt), wrs_ref[l],
                      preferred_element_type=jnp.float32) + brs_ref[l])      # (rows, 2H) f32
        # Accumulate the full 2H width: skip lives on lanes H:2H; the res lanes are
        # junk here and are killed later by the zero rows of the padded post weight.
        out_acc = rs if out_acc is None else out_acc + rs
        if l < N_LAYERS - 1:
            h = (h + rs[:, :H]) * mask       # res on lanes 0:H -> offset-0 slice (cheap)
    out_acc = out_acc * mask

    # --- `post` 1x1 conv + affine coupling.
    # wpost_ref is (2H, 2C): contraction rows 0:H are zero (skip sits on lanes H:2H of
    # out_acc); columns are [ [m|logs] | [logs|m] ] so m is already on the x1 lanes.
    statsb = (jnp.dot(out_acc.astype(mm_dt), wpost_ref[...],
                      preferred_element_type=jnp.float32) + bpost_ref[...]) * mask  # (rows, 2C)
    stats = statsb[:, :CHANNELS]             # [m | logs]
    m_aligned = statsb[:, CHANNELS:]         # [logs | m]

    lane = jax.lax.broadcasted_iota(jnp.int32, (rows, CHANNELS), 1)
    upper = lane >= HALF                     # x1 / logs lanes
    logs_only = jnp.where(upper, stats, 0.0)             # exp() never sees the m lanes
    x1_new = m_aligned + x * jnp.exp(logs_only) * mask   # valid on the upper lanes
    x_full = jnp.where(upper, x1_new, x)                 # [x0 | m + x1*exp(logs)*mask]

    # One full-block store for the coupling output (free leading-dim reshape).
    xout_ref[...] = x_full.reshape(B, T, CHANNELS)

    # logdet = sum of logs over (channel, time); logs are already masked, so padded
    # frames add 0.  Single grid step -> the tiny (1,1) VMEM writes below are one-time.
    for bb in range(B):
        ld = jnp.sum(logs_only[bb * T:(bb + 1) * T, :], axis=1, keepdims=True)   # (T, 1)
        logdet_ref[bb] = jnp.sum(ld, axis=0, keepdims=True)                      # (1, 1)


# ------------------------------------ wrapper ---------------------------------------
@functools.partial(jax.jit, static_argnames=("use_bf16",))
def _coupling_forward_jit(x_nct, x_mask_n1t, params, use_bf16):
    L, K, H = N_LAYERS, KERNEL_SIZE, HIDDEN
    mm_dt = jnp.bfloat16 if use_bf16 else jnp.float32

    # TODO(synk): at production T, flip to channels-on-sublanes / time-on-lanes
    # (consume/produce NCW directly, lane-dense stores) and drop these transposes.
    x_btc = jnp.transpose(x_nct, (0, 2, 1)).astype(jnp.float32)          # (B, T, C)
    mask_bt1 = jnp.transpose(x_mask_n1t, (0, 2, 1)).astype(jnp.float32)  # (B, T, 1)

    # ---- wrapper-side weight plumbing (layout work stays out of the kernel) ----
    # Gate conv: [tanh | sigmoid] fused along the output dim, K taps fused along the
    # contraction: (L, K, H, 2H) -> (L, K*H, 2H).
    w_gate = jnp.concatenate([params["win_tanh"], params["win_sig"]], axis=-1)
    w_gate = w_gate.reshape(L, K * H, 2 * H)
    b_gate = jnp.concatenate([params["bin_tanh"], params["bin_sig"]], axis=-1)   # (L, 1, 2H)
    # Res/skip conv fused with output lanes [res | skip]; the last layer is skip-only
    # (PyTorch res_skip_layers[-1] has no residual output), so its res half is zeroed.
    w_rs = jnp.concatenate([params["w_res"], params["w_skip"]], axis=-1)         # (L, H, 2H)
    w_rs = w_rs.at[L - 1, :, :H].set(0.0)
    b_rs = jnp.concatenate([params["b_res"], params["b_skip"]], axis=-1)         # (L, 1, 2H)
    b_rs = b_rs.at[L - 1, :, :H].set(0.0)
    # Post conv: doubled output [ [m|logs] | [logs|m] ], contraction rows 0:H zeroed so
    # the fused [res|skip] accumulator can be fed full-width (res junk contributes 0).
    wpost2 = jnp.concatenate([params["wpost"], params["wpost"][:, HALF:],
                              params["wpost"][:, :HALF]], axis=1)                # (H, 2C)
    bpost2 = jnp.concatenate([params["bpost"], params["bpost"][:, HALF:],
                              params["bpost"][:, :HALF]], axis=1)                # (1, 2C)
    wpost_pad = jnp.concatenate([jnp.zeros_like(wpost2), wpost2], axis=0)        # (2H, 2C)

    # bf16 MXU operands (halves weight DMA, native MXU dtype on v6e/v7x); biases,
    # masks and all elementwise math stay f32 (v5e VPU/EUP have no bf16).
    w_gate = w_gate.astype(mm_dt)
    w_rs = w_rs.astype(mm_dt)
    wpost_pad = wpost_pad.astype(mm_dt)

    # Whole problem in one grid step: at B*T = 32 rows every matmul under-fills the MXU
    # and the kernel is fixed-overhead bound, so batch grids / TC-splitting only add cost.
    # TODO(synk): at production scale, add a T grid axis (halo'd), stream weights
    # per-layer for v7x's 64 MiB VMEM, and set vmem_limit_bytes explicitly (v5e's
    # default scoped VMEM is only 16 MiB).
    grid_spec = pltpu.PrefetchScalarGridSpec(
        num_scalar_prefetch=0,
        grid=(1,),
        in_specs=[
            pl.BlockSpec((B, T, CHANNELS), lambda b: (0, 0, 0)),
            pl.BlockSpec((B, T, 1), lambda b: (0, 0, 0)),
            pl.BlockSpec((HALF, H), lambda b: (0, 0)),
            pl.BlockSpec((1, H), lambda b: (0, 0)),
            pl.BlockSpec((L, K * H, 2 * H), lambda b: (0, 0, 0)),
            pl.BlockSpec((L, 1, 2 * H), lambda b: (0, 0, 0)),
            pl.BlockSpec((L, H, 2 * H), lambda b: (0, 0, 0)),
            pl.BlockSpec((L, 1, 2 * H), lambda b: (0, 0, 0)),
            pl.BlockSpec((2 * H, 2 * CHANNELS), lambda b: (0, 0)),
            pl.BlockSpec((1, 2 * CHANNELS), lambda b: (0, 0)),
        ],
        out_specs=[
            pl.BlockSpec((B, T, CHANNELS), lambda b: (0, 0, 0)),
            pl.BlockSpec((B, 1, 1), lambda b: (0, 0, 0)),
        ],
    )

    x_out_btc, logdet = pl.pallas_call(
        coupling_kernel,
        grid_spec=grid_spec,
        out_shape=(
            jax.ShapeDtypeStruct((B, T, CHANNELS), jnp.float32),
            jax.ShapeDtypeStruct((B, 1, 1), jnp.float32),
        ),
        compiler_params=pltpu.CompilerParams(dimension_semantics=("arbitrary",)),
    )(x_btc, mask_bt1,
      params["wpre"], params["bpre"],
      w_gate, b_gate, w_rs, b_rs, wpost_pad, bpost2)

    return jnp.transpose(x_out_btc, (0, 2, 1)), logdet.reshape(B)


def residual_coupling_forward(x_nct, x_mask_n1t, params, use_bf16=True):
    """x_nct: (B, C, T), x_mask_n1t: (B, 1, T) — PyTorch layout. Returns ((B, C, T), (B,))."""
    return _coupling_forward_jit(x_nct, x_mask_n1t, params, use_bf16=use_bf16)


# ----------------------------- pure-JAX reference (check) ----------------------------
def reference_forward(x_nct, x_mask_n1t, params):
    x = jnp.transpose(x_nct, (0, 2, 1))          # (B, T, C)
    mask = jnp.transpose(x_mask_n1t, (0, 2, 1))  # (B, T, 1)
    x0, x1 = x[..., :HALF], x[..., HALF:]
    h = (jnp.einsum("btc,ch->bth", x0, params["wpre"]) + params["bpre"]) * mask
    out = jnp.zeros_like(h)
    for l in range(N_LAYERS):
        dil = DILATION_RATE ** l
        pad = dil * (KERNEL_SIZE - 1) // 2
        hpad = jnp.pad(h, ((0, 0), (pad, pad), (0, 0)))
        pre_t = jnp.zeros((x.shape[0], T, HIDDEN)) + params["bin_tanh"][l]
        pre_s = jnp.zeros((x.shape[0], T, HIDDEN)) + params["bin_sig"][l]
        for k in range(KERNEL_SIZE):
            seg = hpad[:, k * dil:k * dil + T, :]
            pre_t = pre_t + jnp.einsum("bth,ho->bto", seg, params["win_tanh"][l, k])
            pre_s = pre_s + jnp.einsum("bth,ho->bto", seg, params["win_sig"][l, k])
        acts = jnp.tanh(pre_t) * jax.nn.sigmoid(pre_s)
        out = out + jnp.einsum("bth,ho->bto", acts, params["w_skip"][l]) + params["b_skip"][l]
        if l < N_LAYERS - 1:
            res = jnp.einsum("bth,ho->bto", acts, params["w_res"][l]) + params["b_res"][l]
            h = (h + res) * mask
    out = out * mask
    stats = (jnp.einsum("bth,hc->btc", out, params["wpost"]) + params["bpost"]) * mask
    m, logs = stats[..., :HALF], stats[..., HALF:]
    x1n = m + x1 * jnp.exp(logs) * mask
    xo = jnp.concatenate([x0, x1n], axis=-1)
    return jnp.transpose(xo, (0, 2, 1)), jnp.sum(logs, axis=(1, 2))


# ------------------------------- deterministic init ----------------------------------
def init_params(key, zero_post=True):
    ks = jax.random.split(key, 12)
    rnd = lambda k, shape, s: jax.random.normal(k, shape, jnp.float32) * s
    p = {
        "wpre": rnd(ks[0], (HALF, HIDDEN), 0.3),
        "bpre": rnd(ks[1], (1, HIDDEN), 0.1),
        # gated-conv weights split into tanh / sigmoid halves (fused in the wrapper)
        "win_tanh": rnd(ks[2], (N_LAYERS, KERNEL_SIZE, HIDDEN, HIDDEN), 0.1),
        "win_sig":  rnd(ks[3], (N_LAYERS, KERNEL_SIZE, HIDDEN, HIDDEN), 0.1),
        "bin_tanh": rnd(ks[4], (N_LAYERS, 1, HIDDEN), 0.1),
        "bin_sig":  rnd(ks[5], (N_LAYERS, 1, HIDDEN), 0.1),
        # res path exists for layers 0..L-2; the final layer's res_skip conv is skip-only
        # (PyTorch: res_skip_channels == hidden_channels on the last layer), so
        # w_res[L-1]/b_res[L-1] are unused (the wrapper zeroes them in the fused weight).
        "w_res":  rnd(ks[6], (N_LAYERS, HIDDEN, HIDDEN), 0.1),
        "b_res":  rnd(ks[7], (N_LAYERS, 1, HIDDEN), 0.1),
        "w_skip": rnd(ks[8], (N_LAYERS, HIDDEN, HIDDEN), 0.1),
        "b_skip": rnd(ks[9], (N_LAYERS, 1, HIDDEN), 0.1),
    }
    if zero_post:
        # module zero-initializes `post` (post.weight.data.zero_(); post.bias.data.zero_())
        p["wpost"] = jnp.zeros((HIDDEN, CHANNELS), jnp.float32)
        p["bpost"] = jnp.zeros((1, CHANNELS), jnp.float32)
    else:
        # non-zero post so the full kernel path is numerically exercised
        p["wpost"] = rnd(ks[10], (HIDDEN, CHANNELS), 0.05)
        p["bpost"] = rnd(ks[11], (1, CHANNELS), 0.05)
    return p


# --------------------------------------- main ----------------------------------------
if __name__ == "__main__":
    key = jax.random.PRNGKey(0)
    kx, kp = jax.random.split(key)

    x = jax.random.normal(kx, (B, CHANNELS, T), jnp.float32)          # (B, C, T) PyTorch layout
    lengths = jnp.array([T, T - 4], dtype=jnp.int32)
    x_mask = (jnp.arange(T)[None, None, :] < lengths[:, None, None]).astype(jnp.float32)  # (B, 1, T)

    for zero_post in (True, False):
        params = init_params(kp, zero_post=zero_post)
        x_ref_out, ld_ref = reference_forward(x, x_mask, params)
        for use_bf16 in (False, True):
            x_out, logdet = residual_coupling_forward(x, x_mask, params, use_bf16=use_bf16)
            jax.block_until_ready((x_out, logdet))
            assert x_out.shape == (B, CHANNELS, T) and logdet.shape == (B,)
            if use_bf16:
                # bf16 MXU operands carry ~2-3 significant digits; f32 accumulation.
                atol_x, rtol_x, atol_ld = 5e-2, 5e-2, 1.5e-1
            else:
                atol_x, rtol_x, atol_ld = 1e-4, 1e-4, 1e-4
            assert jnp.allclose(x_out, x_ref_out, atol=atol_x, rtol=rtol_x), \
                f"x mismatch (zero_post={zero_post}, bf16={use_bf16})"
            assert jnp.allclose(logdet, ld_ref, atol=atol_ld, rtol=rtol_x), \
                f"logdet mismatch (zero_post={zero_post}, bf16={use_bf16})"

    print("KERNEL_OK")
</pallas_src>

<mosaic_0001>
module attributes {stable_mosaic.version = 11 : i64} {
  func.func @coupling_kernel(%arg0: i32, %arg1: memref<2x16x4xf32, #tpu.memory_space<vmem>>, %arg2: memref<2x16x1xf32, #tpu.memory_space<vmem>>, %arg3: memref<2x32xf32, #tpu.memory_space<vmem>>, %arg4: memref<1x32xf32, #tpu.memory_space<vmem>>, %arg5: memref<4x96x64xf32, #tpu.memory_space<vmem>>, %arg6: memref<4x1x64xf32, #tpu.memory_space<vmem>>, %arg7: memref<4x32x64xf32, #tpu.memory_space<vmem>>, %arg8: memref<4x1x64xf32, #tpu.memory_space<vmem>>, %arg9: memref<64x8xf32, #tpu.memory_space<vmem>>, %arg10: memref<1x8xf32, #tpu.memory_space<vmem>>, %arg11: memref<2x16x4xf32, #tpu.memory_space<vmem>>, %arg12: memref<2x1x1xf32, #tpu.memory_space<vmem>>) attributes {dimension_semantics = [#tpu.dimension_semantics<arbitrary>], iteration_bounds = array<i64: 1>, scalar_prefetch = 0 : i64, scratch_operands = 0 : i64, tpu.core_type = #tpu.core_type<tc>, window_params = [{pipeline_mode = #tpu.pipeline_mode<synchronous>, transform_indices = @transform_0, window_bounds = array<i64: 2, 16, 4>}, {pipeline_mode = #tpu.pipeline_mode<synchronous>, transform_indices = @transform_1, window_bounds = array<i64: 2, 16, 1>}, {pipeline_mode = #tpu.pipeline_mode<synchronous>, transform_indices = @transform_2, window_bounds = array<i64: 2, 32>}, {pipeline_mode = #tpu.pipeline_mode<synchronous>, transform_indices = @transform_3, window_bounds = array<i64: 1, 32>}, {pipeline_mode = #tpu.pipeline_mode<synchronous>, transform_indices = @transform_4, window_bounds = array<i64: 4, 96, 64>}, {pipeline_mode = #tpu.pipeline_mode<synchronous>, transform_indices = @transform_5, window_bounds = array<i64: 4, 1, 64>}, {pipeline_mode = #tpu.pipeline_mode<synchronous>, transform_indices = @transform_6, window_bounds = array<i64: 4, 32, 64>}, {pipeline_mode = #tpu.pipeline_mode<synchronous>, transform_indices = @transform_7, window_bounds = array<i64: 4, 1, 64>}, {pipeline_mode = #tpu.pipeline_mode<synchronous>, transform_indices = @transform_8, window_bounds = array<i64: 64, 8>}, {pipeline_mode = #tpu.pipeline_mode<synchronous>, transform_indices = @transform_9, window_bounds = array<i64: 1, 8>}, {pipeline_mode = #tpu.pipeline_mode<synchronous>, transform_indices = @transform_10, window_bounds = array<i64: 2, 16, 4>}, {pipeline_mode = #tpu.pipeline_mode<synchronous>, transform_indices = @transform_11, window_bounds = array<i64: 2, 1, 1>}]} {
    %c0 = arith.constant 0 : index
    %c0_0 = arith.constant 0 : index
    %c0_1 = arith.constant 0 : index
    %0 = vector.load %arg1[%c0, %c0_0, %c0_1] : memref<2x16x4xf32, #tpu.memory_space<vmem>>, vector<2x16x4xf32>
    %1 = vector.shape_cast %0 : vector<2x16x4xf32> to vector<32x4xf32>
    %c0_2 = arith.constant 0 : index
    %c0_3 = arith.constant 0 : index
    %c0_4 = arith.constant 0 : index
    %2 = vector.load %arg2[%c0_2, %c0_3, %c0_4] : memref<2x16x1xf32, #tpu.memory_space<vmem>>, vector<2x16x1xf32>
    %3 = vector.shape_cast %2 : vector<2x16x1xf32> to vector<32x1xf32>
    %4 = tpu.iota {dimensions = array<i32: 0>} : vector<16x1xi32>
    %5 = tpu.concatenate %4, %4 in 0 : vector<16x1xi32>, vector<16x1xi32> -> vector<32x1xi32>
    %c0_5 = arith.constant 0 : index
    %c0_6 = arith.constant 0 : index
    %6 = vector.load %arg3[%c0_5, %c0_6] : memref<2x32xf32, #tpu.memory_space<vmem>>, vector<2x32xf32>
    %c0_7 = arith.constant 0 : index
    %c0_8 = arith.constant 0 : index
    %7 = vector.load %arg4[%c0_7, %c0_8] : memref<1x32xf32, #tpu.memory_space<vmem>>, vector<1x32xf32>
    %8 = vector.extract_strided_slice %1 {offsets = [0, 0], sizes = [32, 1], strides = [1, 1]} : vector<32x4xf32> to vector<32x1xf32>
    %9 = vector.extract_strided_slice %6 {offsets = [0, 0], sizes = [1, 32], strides = [1, 1]} : vector<2x32xf32> to vector<1x32xf32>
    %10 = vector.broadcast %8 : vector<32x1xf32> to vector<32x32xf32>
    %11 = vector.broadcast %9 : vector<1x32xf32> to vector<32x32xf32>
    %12 = arith.mulf %10, %11 : vector<32x32xf32>
    %13 = vector.broadcast %7 : vector<1x32xf32> to vector<32x32xf32>
    %14 = arith.addf %13, %12 : vector<32x32xf32>
    %15 = vector.extract_strided_slice %1 {offsets = [0, 1], sizes = [32, 1], strides = [1, 1]} : vector<32x4xf32> to vector<32x1xf32>
    %16 = vector.extract_strided_slice %6 {offsets = [1, 0], sizes = [1, 32], strides = [1, 1]} : vector<2x32xf32> to vector<1x32xf32>
    %17 = vector.broadcast %15 : vector<32x1xf32> to vector<32x32xf32>
    %18 = vector.broadcast %16 : vector<1x32xf32> to vector<32x32xf32>
    %19 = arith.mulf %17, %18 : vector<32x32xf32>
    %20 = arith.addf %14, %19 : vector<32x32xf32>
    %21 = vector.broadcast %3 : vector<32x1xf32> to vector<32x32xf32>
    %22 = arith.mulf %20, %21 : vector<32x32xf32>
    %c1_i32 = arith.constant 1 : i32
    %23 = vector.broadcast %c1_i32 : i32 to vector<32x1xi32>
    %24 = arith.cmpi sge, %5, %23 : vector<32x1xi32>
    %25 = arith.extui %24 : vector<32x1xi1> to vector<32x1xi32>
    %26 = arith.sitofp %25 : vector<32x1xi32> to vector<32x1xf32>
    %c1_i32_9 = arith.constant 1 : i32
    %27 = tpu.dynamic_rotate %22 by %c1_i32_9 dim 0 : vector<32x32xf32>, i32 -> vector<32x32xf32>
    %28 = vector.broadcast %26 : vector<32x1xf32> to vector<32x32xf32>
    %29 = arith.mulf %27, %28 : vector<32x32xf32>
    %c15_i32 = arith.constant 15 : i32
    %30 = vector.broadcast %c15_i32 : i32 to vector<32x1xi32>
    %31 = arith.cmpi slt, %5, %30 : vector<32x1xi32>
    %32 = arith.extui %31 : vector<32x1xi1> to vector<32x1xi32>
    %33 = arith.sitofp %32 : vector<32x1xi32> to vector<32x1xf32>
    %c31_i32 = arith.constant 31 : i32
    %34 = tpu.dynamic_rotate %22 by %c31_i32 dim 0 : vector<32x32xf32>, i32 -> vector<32x32xf32>
    %35 = vector.broadcast %33 : vector<32x1xf32> to vector<32x32xf32>
    %36 = arith.mulf %34, %35 : vector<32x32xf32>
    %37 = tpu.concatenate %29, %22, %36 in 1 : vector<32x32xf32>, vector<32x32xf32>, vector<32x32xf32> -> vector<32x96xf32>
    %c0_10 = arith.constant 0 : index
    %c0_11 = arith.constant 0 : index
    %c0_12 = arith.constant 0 : index
    %38 = vector.load %arg5[%c0_10, %c0_11, %c0_12] : memref<4x96x64xf32, #tpu.memory_space<vmem>>, vector<1x96x64xf32>
    %39 = vector.shape_cast %38 : vector<1x96x64xf32> to vector<96x64xf32>
    %cst = arith.constant dense<0.000000e+00> : vector<32x64xf32>
    %40 = tpu.matmul %37, %39, %cst {dimension_numbers = #tpu.dot_dimension_numbers<[1], [0], [0], [1], [0, 0, 1, 1], [], []>} : vector<32x96xf32>, vector<96x64xf32>, vector<32x64xf32> -> vector<32x64xf32>
    %c0_13 = arith.constant 0 : index
    %c0_14 = arith.constant 0 : index
    %c0_15 = arith.constant 0 : index
    %41 = vector.load %arg6[%c0_13, %c0_14, %c0_15] : memref<4x1x64xf32, #tpu.memory_space<vmem>>, vector<1x1x64xf32>
    %42 = vector.shape_cast %41 : vector<1x1x64xf32> to vector<1x64xf32>
    %43 = vector.broadcast %42 : vector<1x64xf32> to vector<32x64xf32>
    %44 = arith.addf %40, %43 : vector<32x64xf32>
    %45 = vector.extract_strided_slice %44 {offsets = [0, 0], sizes = [32, 32], strides = [1, 1]} : vector<32x64xf32> to vector<32x32xf32>
    %46 = math.tanh %45 : vector<32x32xf32>
    %47 = vector.extract_strided_slice %44 {offsets = [0, 32], sizes = [32, 32], strides = [1, 1]} : vector<32x64xf32> to vector<32x32xf32>
    %48 = arith.negf %47 : vector<32x32xf32>
    %49 = math.exp %48 : vector<32x32xf32>
    %cst_16 = arith.constant 1.000000e+00 : f32
    %50 = vector.broadcast %cst_16 : f32 to vector<32x32xf32>
    %51 = arith.addf %50, %49 : vector<32x32xf32>
    %52 = arith.divf %50, %51 : vector<32x32xf32>
    %53 = arith.mulf %46, %52 : vector<32x32xf32>
    %c0_17 = arith.constant 0 : index
    %c0_18 = arith.constant 0 : index
    %c0_19 = arith.constant 0 : index
    %54 = vector.load %arg7[%c0_17, %c0_18, %c0_19] : memref<4x32x64xf32, #tpu.memory_space<vmem>>, vector<1x32x64xf32>
    %55 = vector.shape_cast %54 : vector<1x32x64xf32> to vector<32x64xf32>
    %cst_20 = arith.constant dense<0.000000e+00> : vector<32x64xf32>
    %56 = tpu.matmul %53, %55, %cst_20 {dimension_numbers = #tpu.dot_dimension_numbers<[1], [0], [0], [1], [0, 0, 1, 1], [], []>} : vector<32x32xf32>, vector<32x64xf32>, vector<32x64xf32> -> vector<32x64xf32>
    %c0_21 = arith.constant 0 : index
    %c0_22 = arith.constant 0 : index
    %c0_23 = arith.constant 0 : index
    %57 = vector.load %arg8[%c0_21, %c0_22, %c0_23] : memref<4x1x64xf32, #tpu.memory_space<vmem>>, vector<1x1x64xf32>
    %58 = vector.shape_cast %57 : vector<1x1x64xf32> to vector<1x64xf32>
    %59 = vector.broadcast %58 : vector<1x64xf32> to vector<32x64xf32>
    %60 = arith.addf %56, %59 : vector<32x64xf32>
    %61 = vector.extract_strided_slice %60 {offsets = [0, 0], sizes = [32, 32], strides = [1, 1]} : vector<32x64xf32> to vector<32x32xf32>
    %62 = arith.addf %22, %61 : vector<32x32xf32>
    %63 = vector.broadcast %3 : vector<32x1xf32> to vector<32x32xf32>
    %64 = arith.mulf %62, %63 : vector<32x32xf32>
    %c1_i32_24 = arith.constant 1 : i32
    %65 = tpu.dynamic_rotate %64 by %c1_i32_24 dim 0 : vector<32x32xf32>, i32 -> vector<32x32xf32>
    %66 = vector.broadcast %26 : vector<32x1xf32> to vector<32x32xf32>
    %67 = arith.mulf %65, %66 : vector<32x32xf32>
    %c31_i32_25 = arith.constant 31 : i32
    %68 = tpu.dynamic_rotate %64 by %c31_i32_25 dim 0 : vector<32x32xf32>, i32 -> vector<32x32xf32>
    %69 = vector.broadcast %33 : vector<32x1xf32> to vector<32x32xf32>
    %70 = arith.mulf %68, %69 : vector<32x32xf32>
    %71 = tpu.concatenate %67, %64, %70 in 1 : vector<32x32xf32>, vector<32x32xf32>, vector<32x32xf32> -> vector<32x96xf32>
    %c1 = arith.constant 1 : index
    %c0_26 = arith.constant 0 : index
    %c0_27 = arith.constant 0 : index
    %72 = vector.load %arg5[%c1, %c0_26, %c0_27] : memref<4x96x64xf32, #tpu.memory_space<vmem>>, vector<1x96x64xf32>
    %73 = vector.shape_cast %72 : vector<1x96x64xf32> to vector<96x64xf32>
    %cst_28 = arith.constant dense<0.000000e+00> : vector<32x64xf32>
    %74 = tpu.matmul %71, %73, %cst_28 {dimension_numbers = #tpu.dot_dimension_numbers<[1], [0], [0], [1], [0, 0, 1, 1], [], []>} : vector<32x96xf32>, vector<96x64xf32>, vector<32x64xf32> -> vector<32x64xf32>
    %c1_29 = arith.constant 1 : index
    %c0_30 = arith.constant 0 : index
    %c0_31 = arith.constant 0 : index
    %75 = vector.load %arg6[%c1_29, %c0_30, %c0_31] : memref<4x1x64xf32, #tpu.memory_space<vmem>>, vector<1x1x64xf32>
    %76 = vector.shape_cast %75 : vector<1x1x64xf32> to vector<1x64xf32>
    %77 = vector.broadcast %76 : vector<1x64xf32> to vector<32x64xf32>
    %78 = arith.addf %74, %77 : vector<32x64xf32>
    %79 = vector.extract_strided_slice %78 {offsets = [0, 0], sizes = [32, 32], strides = [1, 1]} : vector<32x64xf32> to vector<32x32xf32>
    %80 = math.tanh %79 : vector<32x32xf32>
    %81 = vector.extract_strided_slice %78 {offsets = [0, 32], sizes = [32, 32], strides = [1, 1]} : vector<32x64xf32> to vector<32x32xf32>
    %82 = arith.negf %81 : vector<32x32xf32>
    %83 = math.exp %82 : vector<32x32xf32>
    %cst_32 = arith.constant 1.000000e+00 : f32
    %84 = vector.broadcast %cst_32 : f32 to vector<32x32xf32>
    %85 = arith.addf %84, %83 : vector<32x32xf32>
    %86 = arith.divf %84, %85 : vector<32x32xf32>
    %87 = arith.mulf %80, %86 : vector<32x32xf32>
    %c1_33 = arith.constant 1 : index
    %c0_34 = arith.constant 0 : index
    %c0_35 = arith.constant 0 : index
    %88 = vector.load %arg7[%c1_33, %c0_34, %c0_35] : memref<4x32x64xf32, #tpu.memory_space<vmem>>, vector<1x32x64xf32>
    %89 = vector.shape_cast %88 : vector<1x32x64xf32> to vector<32x64xf32>
    %cst_36 = arith.constant dense<0.000000e+00> : vector<32x64xf32>
    %90 = tpu.matmul %87, %89, %cst_36 {dimension_numbers = #tpu.dot_dimension_numbers<[1], [0], [0], [1], [0, 0, 1, 1], [], []>} : vector<32x32xf32>, vector<32x64xf32>, vector<32x64xf32> -> vector<32x64xf32>
    %c1_37 = arith.constant 1 : index
    %c0_38 = arith.constant 0 : index
    %c0_39 = arith.constant 0 : index
    %91 = vector.load %arg8[%c1_37, %c0_38, %c0_39] : memref<4x1x64xf32, #tpu.memory_space<vmem>>, vector<1x1x64xf32>
    %92 = vector.shape_cast %91 : vector<1x1x64xf32> to vector<1x64xf32>
    %93 = vector.broadcast %92 : vector<1x64xf32> to vector<32x64xf32>
    %94 = arith.addf %90, %93 : vector<32x64xf32>
    %95 = arith.addf %60, %94 : vector<32x64xf32>
    %96 = vector.extract_strided_slice %94 {offsets = [0, 0], sizes = [32, 32], strides = [1, 1]} : vector<32x64xf32> to vector<32x32xf32>
    %97 = arith.addf %64, %96 : vector<32x32xf32>
    %98 = vector.broadcast %3 : vector<32x1xf32> to vector<32x32xf32>
    %99 = arith.mulf %97, %98 : vector<32x32xf32>
    %c1_i32_40 = arith.constant 1 : i32
    %100 = tpu.dynamic_rotate %99 by %c1_i32_40 dim 0 : vector<32x32xf32>, i32 -> vector<32x32xf32>
    %101 = vector.broadcast %26 : vector<32x1xf32> to vector<32x32xf32>
    %102 = arith.mulf %100, %101 : vector<32x32xf32>
    %c31_i32_41 = arith.constant 31 : i32
    %103 = tpu.dynamic_rotate %99 by %c31_i32_41 dim 0 : vector<32x32xf32>, i32 -> vector<32x32xf32>
    %104 = vector.broadcast %33 : vector<32x1xf32> to vector<32x32xf32>
    %105 = arith.mulf %103, %104 : vector<32x32xf32>
    %106 = tpu.concatenate %102, %99, %105 in 1 : vector<32x32xf32>, vector<32x32xf32>, vector<32x32xf32> -> vector<32x96xf32>
    %c2 = arith.constant 2 : index
    %c0_42 = arith.constant 0 : index
    %c0_43 = arith.constant 0 : index
    %107 = vector.load %arg5[%c2, %c0_42, %c0_43] : memref<4x96x64xf32, #tpu.memory_space<vmem>>, vector<1x96x64xf32>
    %108 = vector.shape_cast %107 : vector<1x96x64xf32> to vector<96x64xf32>
    %cst_44 = arith.constant dense<0.000000e+00> : vector<32x64xf32>
    %109 = tpu.matmul %106, %108, %cst_44 {dimension_numbers = #tpu.dot_dimension_numbers<[1], [0], [0], [1], [0, 0, 1, 1], [], []>} : vector<32x96xf32>, vector<96x64xf32>, vector<32x64xf32> -> vector<32x64xf32>
    %c2_45 = arith.constant 2 : index
    %c0_46 = arith.constant 0 : index
    %c0_47 = arith.constant 0 : index
    %110 = vector.load %arg6[%c2_45, %c0_46, %c0_47] : memref<4x1x64xf32, #tpu.memory_space<vmem>>, vector<1x1x64xf32>
    %111 = vector.shape_cast %110 : vector<1x1x64xf32> to vector<1x64xf32>
    %112 = vector.broadcast %111 : vector<1x64xf32> to vector<32x64xf32>
    %113 = arith.addf %109, %112 : vector<32x64xf32>
    %114 = vector.extract_strided_slice %113 {offsets = [0, 0], sizes = [32, 32], strides = [1, 1]} : vector<32x64xf32> to vector<32x32xf32>
    %115 = math.tanh %114 : vector<32x32xf32>
    %116 = vector.extract_strided_slice %113 {offsets = [0, 32], sizes = [32, 32], strides = [1, 1]} : vector<32x64xf32> to vector<32x32xf32>
    %117 = arith.negf %116 : vector<32x32xf32>
    %118 = math.exp %117 : vector<32x32xf32>
    %cst_48 = arith.constant 1.000000e+00 : f32
    %119 = vector.broadcast %cst_48 : f32 to vector<32x32xf32>
    %120 = arith.addf %119, %118 : vector<32x32xf32>
    %121 = arith.divf %119, %120 : vector<32x32xf32>
    %122 = arith.mulf %115, %121 : vector<32x32xf32>
    %c2_49 = arith.constant 2 : index
    %c0_50 = arith.constant 0 : index
    %c0_51 = arith.constant 0 : index
    %123 = vector.load %arg7[%c2_49, %c0_50, %c0_51] : memref<4x32x64xf32, #tpu.memory_space<vmem>>, vector<1x32x64xf32>
    %124 = vector.shape_cast %123 : vector<1x32x64xf32> to vector<32x64xf32>
    %cst_52 = arith.constant dense<0.000000e+00> : vector<32x64xf32>
    %125 = tpu.matmul %122, %124, %cst_52 {dimension_numbers = #tpu.dot_dimension_numbers<[1], [0], [0], [1], [0, 0, 1, 1], [], []>} : vector<32x32xf32>, vector<32x64xf32>, vector<32x64xf32> -> vector<32x64xf32>
    %c2_53 = arith.constant 2 : index
    %c0_54 = arith.constant 0 : index
    %c0_55 = arith.constant 0 : index
    %126 = vector.load %arg8[%c2_53, %c0_54, %c0_55] : memref<4x1x64xf32, #tpu.memory_space<vmem>>, vector<1x1x64xf32>
    %127 = vector.shape_cast %126 : vector<1x1x64xf32> to vector<1x64xf32>
    %128 = vector.broadcast %127 : vector<1x64xf32> to vector<32x64xf32>
    %129 = arith.addf %125, %128 : vector<32x64xf32>
    %130 = arith.addf %95, %129 : vector<32x64xf32>
    %131 = vector.extract_strided_slice %129 {offsets = [0, 0], sizes = [32, 32], strides = [1, 1]} : vector<32x64xf32> to vector<32x32xf32>
    %132 = arith.addf %99, %131 : vector<32x32xf32>
    %133 = vector.broadcast %3 : vector<32x1xf32> to vector<32x32xf32>
    %134 = arith.mulf %132, %133 : vector<32x32xf32>
    %c1_i32_56 = arith.constant 1 : i32
    %135 = tpu.dynamic_rotate %134 by %c1_i32_56 dim 0 : vector<32x32xf32>, i32 -> vector<32x32xf32>
    %136 = vector.broadcast %26 : vector<32x1xf32> to vector<32x32xf32>
    %137 = arith.mulf %135, %136 : vector<32x32xf32>
    %c31_i32_57 = arith.constant 31 : i32
    %138 = tpu.dynamic_rotate %134 by %c31_i32_57 dim 0 : vector<32x32xf32>, i32 -> vector<32x32xf32>
    %139 = vector.broadcast %33 : vector<32x1xf32> to vector<32x32xf32>
    %140 = arith.mulf %138, %139 : vector<32x32xf32>
    %141 = tpu.concatenate %137, %134, %140 in 1 : vector<32x32xf32>, vector<32x32xf32>, vector<32x32xf32> -> vector<32x96xf32>
    %c3 = arith.constant 3 : index
    %c0_58 = arith.constant 0 : index
    %c0_59 = arith.constant 0 : index
    %142 = vector.load %arg5[%c3, %c0_58, %c0_59] : memref<4x96x64xf32, #tpu.memory_space<vmem>>, vector<1x96x64xf32>
    %143 = vector.shape_cast %142 : vector<1x96x64xf32> to vector<96x64xf32>
    %cst_60 = arith.constant dense<0.000000e+00> : vector<32x64xf32>
    %144 = tpu.matmul %141, %143, %cst_60 {dimension_numbers = #tpu.dot_dimension_numbers<[1], [0], [0], [1], [0, 0, 1, 1], [], []>} : vector<32x96xf32>, vector<96x64xf32>, vector<32x64xf32> -> vector<32x64xf32>
    %c3_61 = arith.constant 3 : index
    %c0_62 = arith.constant 0 : index
    %c0_63 = arith.constant 0 : index
    %145 = vector.load %arg6[%c3_61, %c0_62, %c0_63] : memref<4x1x64xf32, #tpu.memory_space<vmem>>, vector<1x1x64xf32>
    %146 = vector.shape_cast %145 : vector<1x1x64xf32> to vector<1x64xf32>
    %147 = vector.broadcast %146 : vector<1x64xf32> to vector<32x64xf32>
    %148 = arith.addf %144, %147 : vector<32x64xf32>
    %149 = vector.extract_strided_slice %148 {offsets = [0, 0], sizes = [32, 32], strides = [1, 1]} : vector<32x64xf32> to vector<32x32xf32>
    %150 = math.tanh %149 : vector<32x32xf32>
    %151 = vector.extract_strided_slice %148 {offsets = [0, 32], sizes = [32, 32], strides = [1, 1]} : vector<32x64xf32> to vector<32x32xf32>
    %152 = arith.negf %151 : vector<32x32xf32>
    %153 = math.exp %152 : vector<32x32xf32>
    %cst_64 = arith.constant 1.000000e+00 : f32
    %154 = vector.broadcast %cst_64 : f32 to vector<32x32xf32>
    %155 = arith.addf %154, %153 : vector<32x32xf32>
    %156 = arith.divf %154, %155 : vector<32x32xf32>
    %157 = arith.mulf %150, %156 : vector<32x32xf32>
    %c3_65 = arith.constant 3 : index
    %c0_66 = arith.constant 0 : index
    %c0_67 = arith.constant 0 : index
    %158 = vector.load %arg7[%c3_65, %c0_66, %c0_67] : memref<4x32x64xf32, #tpu.memory_space<vmem>>, vector<1x32x64xf32>
    %159 = vector.shape_cast %158 : vector<1x32x64xf32> to vector<32x64xf32>
    %cst_68 = arith.constant dense<0.000000e+00> : vector<32x64xf32>
    %160 = tpu.matmul %157, %159, %cst_68 {dimension_numbers = #tpu.dot_dimension_numbers<[1], [0], [0], [1], [0, 0, 1, 1], [], []>} : vector<32x32xf32>, vector<32x64xf32>, vector<32x64xf32> -> vector<32x64xf32>
    %c3_69 = arith.constant 3 : index
    %c0_70 = arith.constant 0 : index
    %c0_71 = arith.constant 0 : index
    %161 = vector.load %arg8[%c3_69, %c0_70, %c0_71] : memref<4x1x64xf32, #tpu.memory_space<vmem>>, vector<1x1x64xf32>
    %162 = vector.shape_cast %161 : vector<1x1x64xf32> to vector<1x64xf32>
    %163 = vector.broadcast %162 : vector<1x64xf32> to vector<32x64xf32>
    %164 = arith.addf %160, %163 : vector<32x64xf32>
    %165 = arith.addf %130, %164 : vector<32x64xf32>
    %166 = vector.broadcast %3 : vector<32x1xf32> to vector<32x64xf32>
    %167 = arith.mulf %165, %166 : vector<32x64xf32>
    %c0_72 = arith.constant 0 : index
    %c0_73 = arith.constant 0 : index
    %168 = vector.load %arg9[%c0_72, %c0_73] : memref<64x8xf32, #tpu.memory_space<vmem>>, vector<64x8xf32>
    %cst_74 = arith.constant dense<0.000000e+00> : vector<32x8xf32>
    %169 = tpu.matmul %167, %168, %cst_74 {dimension_numbers = #tpu.dot_dimension_numbers<[1], [0], [0], [1], [0, 0, 1, 1], [], []>} : vector<32x64xf32>, vector<64x8xf32>, vector<32x8xf32> -> vector<32x8xf32>
    %c0_75 = arith.constant 0 : index
    %c0_76 = arith.constant 0 : index
    %170 = vector.load %arg10[%c0_75, %c0_76] : memref<1x8xf32, #tpu.memory_space<vmem>>, vector<1x8xf32>
    %171 = vector.broadcast %170 : vector<1x8xf32> to vector<32x8xf32>
    %172 = arith.addf %169, %171 : vector<32x8xf32>
    %173 = vector.broadcast %3 : vector<32x1xf32> to vector<32x8xf32>
    %174 = arith.mulf %172, %173 : vector<32x8xf32>
    %175 = vector.extract_strided_slice %174 {offsets = [0, 0], sizes = [32, 4], strides = [1, 1]} : vector<32x8xf32> to vector<32x4xf32>
    %176 = vector.extract_strided_slice %174 {offsets = [0, 4], sizes = [32, 4], strides = [1, 1]} : vector<32x8xf32> to vector<32x4xf32>
    %177 = tpu.iota {dimensions = array<i32: 1>} : vector<32x4xi32>
    %c2_i32 = arith.constant 2 : i32
    %178 = vector.broadcast %c2_i32 : i32 to vector<32x4xi32>
    %179 = arith.cmpi sge, %177, %178 : vector<32x4xi32>
    %cst_77 = arith.constant 0.000000e+00 : f32
    %180 = vector.broadcast %cst_77 : f32 to vector<32x4xf32>
    %181 = arith.select %179, %175, %180 : vector<32x4xi1>, vector<32x4xf32>
    %182 = math.exp %181 : vector<32x4xf32>
    %183 = arith.mulf %1, %182 : vector<32x4xf32>
    %184 = vector.broadcast %3 : vector<32x1xf32> to vector<32x4xf32>
    %185 = arith.mulf %183, %184 : vector<32x4xf32>
    %186 = arith.addf %176, %185 : vector<32x4xf32>
    %187 = arith.select %179, %186, %1 : vector<32x4xi1>, vector<32x4xf32>
    %188 = vector.shape_cast %187 : vector<32x4xf32> to vector<2x16x4xf32>
    %c0_78 = arith.constant 0 : index
    %c0_79 = arith.constant 0 : index
    %c0_80 = arith.constant 0 : index
    %189 = vector.load %arg11[%c0_78, %c0_79, %c0_80] : memref<2x16x4xf32, #tpu.memory_space<vmem>>, vector<2x16x4xf32>
    tpu.vector_store %arg11[%c0_78, %c0_79, %c0_80], %188 {strides = array<i32>} : memref<2x16x4xf32, #tpu.memory_space<vmem>>, vector<2x16x4xf32>,
    %190 = vector.extract_strided_slice %181 {offsets = [0, 0], sizes = [16, 4], strides = [1, 1]} : vector<32x4xf32> to vector<16x4xf32>
    %cst_81 = arith.constant dense<0.000000e+00> : vector<16xf32>
    %191 = vector.multi_reduction <add>, %190, %cst_81 [1] : vector<16x4xf32> to vector<16xf32>
    %192 = vector.shape_cast %191 : vector<16xf32> to vector<16x1xf32>
    %cst_82 = arith.constant dense<0.000000e+00> : vector<1xf32>
    %193 = vector.multi_reduction <add>, %192, %cst_82 [0] : vector<16x1xf32> to vector<1xf32>
    %194 = vector.shape_cast %193 : vector<1xf32> to vector<1x1xf32>
    %c0_83 = arith.constant 0 : index
    %c0_84 = arith.constant 0 : index
    %c0_85 = arith.constant 0 : index
    %195 = vector.load %arg12[%c0_83, %c0_84, %c0_85] : memref<2x1x1xf32, #tpu.memory_space<vmem>>, vector<1x1x1xf32>
    %196 = vector.shape_cast %195 : vector<1x1x1xf32> to vector<1x1xf32>
    %197 = vector.shape_cast %194 : vector<1x1xf32> to vector<1x1x1xf32>
    tpu.vector_store %arg12[%c0_83, %c0_84, %c0_85], %197 {strides = array<i32>} : memref<2x1x1xf32, #tpu.memory_space<vmem>>, vector<1x1x1xf32>,
    %198 = vector.extract_strided_slice %181 {offsets = [16, 0], sizes = [16, 4], strides = [1, 1]} : vector<32x4xf32> to vector<16x4xf32>
    %cst_86 = arith.constant dense<0.000000e+00> : vector<16xf32>
    %199 = vector.multi_reduction <add>, %198, %cst_86 [1] : vector<16x4xf32> to vector<16xf32>
    %200 = vector.shape_cast %199 : vector<16xf32> to vector<16x1xf32>
    %cst_87 = arith.constant dense<0.000000e+00> : vector<1xf32>
    %201 = vector.multi_reduction <add>, %200, %cst_87 [0] : vector<16x1xf32> to vector<1xf32>
    %202 = vector.shape_cast %201 : vector<1xf32> to vector<1x1xf32>
    %c1_88 = arith.constant 1 : index
    %c0_89 = arith.constant 0 : index
    %c0_90 = arith.constant 0 : index
    %203 = vector.load %arg12[%c1_88, %c0_89, %c0_90] : memref<2x1x1xf32, #tpu.memory_space<vmem>>, vector<1x1x1xf32>
    %204 = vector.shape_cast %203 : vector<1x1x1xf32> to vector<1x1xf32>
    %205 = vector.shape_cast %202 : vector<1x1xf32> to vector<1x1x1xf32>
    tpu.vector_store %arg12[%c1_88, %c0_89, %c0_90], %205 {strides = array<i32>} : memref<2x1x1xf32, #tpu.memory_space<vmem>>, vector<1x1x1xf32>,
    return
  }
  func.func @transform_0(%arg0: i32) -> (i32, i32, i32) {
    %c0_i32 = arith.constant 0 : i32
    %c0_i32_0 = arith.constant 0 : i32
    %c0_i32_1 = arith.constant 0 : i32
    %c0_i32_2 = arith.constant 0 : i32
    return %c0_i32, %c0_i32_0, %c0_i32_1 : i32, i32, i32
  }
  func.func @transform_1(%arg0: i32) -> (i32, i32, i32) {
    %c0_i32 = arith.constant 0 : i32
    %c0_i32_0 = arith.constant 0 : i32
    %c0_i32_1 = arith.constant 0 : i32
    %c0_i32_2 = arith.constant 0 : i32
    return %c0_i32, %c0_i32_0, %c0_i32_1 : i32, i32, i32
  }
  func.func @transform_2(%arg0: i32) -> (i32, i32) {
    %c0_i32 = arith.constant 0 : i32
    %c0_i32_0 = arith.constant 0 : i32
    %c0_i32_1 = arith.constant 0 : i32
    return %c0_i32, %c0_i32_0 : i32, i32
  }
  func.func @transform_3(%arg0: i32) -> (i32, i32) {
    %c0_i32 = arith.constant 0 : i32
    %c0_i32_0 = arith.constant 0 : i32
    %c0_i32_1 = arith.constant 0 : i32
    return %c0_i32, %c0_i32_0 : i32, i32
  }
  func.func @transform_4(%arg0: i32) -> (i32, i32, i32) {
    %c0_i32 = arith.constant 0 : i32
    %c0_i32_0 = arith.constant 0 : i32
    %c0_i32_1 = arith.constant 0 : i32
    %c0_i32_2 = arith.constant 0 : i32
    return %c0_i32, %c0_i32_0, %c0_i32_1 : i32, i32, i32
  }
  func.func @transform_5(%arg0: i32) -> (i32, i32, i32) {
    %c0_i32 = arith.constant 0 : i32
    %c0_i32_0 = arith.constant 0 : i32
    %c0_i32_1 = arith.constant 0 : i32
    %c0_i32_2 = arith.constant 0 : i32
    return %c0_i32, %c0_i32_0, %c0_i32_1 : i32, i32, i32
  }
  func.func @transform_6(%arg0: i32) -> (i32, i32, i32) {
    %c0_i32 = arith.constant 0 : i32
    %c0_i32_0 = arith.constant 0 : i32
    %c0_i32_1 = arith.constant 0 : i32
    %c0_i32_2 = arith.constant 0 : i32
    return %c0_i32, %c0_i32_0, %c0_i32_1 : i32, i32, i32
  }
  func.func @transform_7(%arg0: i32) -> (i32, i32, i32) {
    %c0_i32 = arith.constant 0 : i32
    %c0_i32_0 = arith.constant 0 : i32
    %c0_i32_1 = arith.constant 0 : i32
    %c0_i32_2 = arith.constant 0 : i32
    return %c0_i32, %c0_i32_0, %c0_i32_1 : i32, i32, i32
  }
  func.func @transform_8(%arg0: i32) -> (i32, i32) {
    %c0_i32 = arith.constant 0 : i32
    %c0_i32_0 = arith.constant 0 : i32
    %c0_i32_1 = arith.constant 0 : i32
    return %c0_i32, %c0_i32_0 : i32, i32
  }
  func.func @transform_9(%arg0: i32) -> (i32, i32) {
    %c0_i32 = arith.constant 0 : i32
    %c0_i32_0 = arith.constant 0 : i32
    %c0_i32_1 = arith.constant 0 : i32
    return %c0_i32, %c0_i32_0 : i32, i32
  }
  func.func @transform_10(%arg0: i32) -> (i32, i32, i32) {
    %c0_i32 = arith.constant 0 : i32
    %c0_i32_0 = arith.constant 0 : i32
    %c0_i32_1 = arith.constant 0 : i32
    %c0_i32_2 = arith.constant 0 : i32
    return %c0_i32, %c0_i32_0, %c0_i32_1 : i32, i32, i32
  }
  func.func @transform_11(%arg0: i32) -> (i32, i32, i32) {
    %c0_i32 = arith.constant 0 : i32
    %c0_i32_0 = arith.constant 0 : i32
    %c0_i32_1 = arith.constant 0 : i32
    %c0_i32_2 = arith.constant 0 : i32
    return %c0_i32, %c0_i32_0, %c0_i32_1 : i32, i32, i32
  }
}

</mosaic_0001>

<llo_original>
// kernel: _coupling_forward_jit.1
$region0: #{_coupling_forward_jit.1}
  #allocation0 [shape = 'u32[]', space=smem, size = 0x4, offset = 0x4, fixed_abs, tag = 'smem constant byte address 0x4 - core index']
  #allocation1 [shape = 'u32[144,128]{1,0:T(1,128)}', space=vmem, size = 0x12000, scoped, tag = 'internal scratch']
  %s0 = inlined_call_operand.vmem [shape: f32[2,16,4], index: 0, kind: input, shape index: {}]
  %s1 = inlined_call_operand.vmem [shape: f32[2,16,1], index: 1, kind: input, shape index: {}]
  %s2 = inlined_call_operand.vmem [shape: f32[2,32], index: 2, kind: input, shape index: {}]
  %s3 = inlined_call_operand.vmem [shape: f32[1,32], index: 3, kind: input, shape index: {}]
  %s4 = inlined_call_operand.vmem [shape: f32[4,96,64], index: 4, kind: input, shape index: {}]
  %s5 = inlined_call_operand.vmem [shape: f32[4,1,64], index: 5, kind: input, shape index: {}]
  %s6 = inlined_call_operand.vmem [shape: f32[4,32,64], index: 6, kind: input, shape index: {}]
  %s7 = inlined_call_operand.vmem [shape: f32[4,1,64], index: 7, kind: input, shape index: {}]
  %s8 = inlined_call_operand.vmem [shape: f32[64,8], index: 8, kind: input, shape index: {}]
  %s9 = inlined_call_operand.vmem [shape: f32[1,8], index: 9, kind: input, shape index: {}]
  %s10 = inlined_call_operand.vmem [shape: f32[2,16,4], index: 10, kind: output, shape index: {0}]
  %s11 = inlined_call_operand.vmem [shape: f32[2,1,1], index: 11, kind: output, shape index: {1}]
  %12 = xla_tuple %s10, %s11
  %s13 = sld [smem:[#allocation0]]
  $region58: #{_coupling_forward_jit.1} parent=0
    _
  %s15 = ssub.s32 1, %s13
  %s16 = scalar_select 0, %s15, %s13
  // Predicated region
  $region2: #{_coupling_forward_jit.1} parent=0 // pred_check
    _
  $region3: #{_coupling_forward_jit.1} parent=0 // pred_check_branch
    %18 = sbr.rel (0) target = $region5
  $region4: #{_coupling_forward_jit.1} parent=0 // pred_region
    _
  $region5: #{_coupling_forward_jit.1} parent=0 // pred_fallthru
    _
  // Predicated region
  $region6: #{_coupling_forward_jit.1} parent=0 // pred_check
    _
  $region7: #{_coupling_forward_jit.1} parent=0 // pred_check_branch
    %20 = sbr.rel (0) target = $region9
  $region8: #{_coupling_forward_jit.1} parent=0 // pred_region
    _
  $region9: #{_coupling_forward_jit.1} parent=0 // pred_fallthru
    _
  // Predicated region
  $region10: #{_coupling_forward_jit.1} parent=0 // pred_check
    _
  $region11: #{_coupling_forward_jit.1} parent=0 // pred_check_branch
    %22 = sbr.rel (0) target = $region13
  $region12: #{_coupling_forward_jit.1} parent=0 // pred_region
    _
  $region13: #{_coupling_forward_jit.1} parent=0 // pred_fallthru
    _
  // Predicated region
  $region14: #{_coupling_forward_jit.1} parent=0 // pred_check
    _
  $region15: #{_coupling_forward_jit.1} parent=0 // pred_check_branch
    %24 = sbr.rel (0) target = $region17
  $region16: #{_coupling_forward_jit.1} parent=0 // pred_region
    _
  $region17: #{_coupling_forward_jit.1} parent=0 // pred_fallthru
    _
  // Predicated region
  $region18: #{_coupling_forward_jit.1} parent=0 // pred_check
    _
  $region19: #{_coupling_forward_jit.1} parent=0 // pred_check_branch
    %26 = sbr.rel (0) target = $region21
  $region20: #{_coupling_forward_jit.1} parent=0 // pred_region
    _
  $region21: #{_coupling_forward_jit.1} parent=0 // pred_fallthru
    _
  // Predicated region
  $region22: #{_coupling_forward_jit.1} parent=0 // pred_check
    _
  $region23: #{_coupling_forward_jit.1} parent=0 // pred_check_branch
    %28 = sbr.rel (0) target = $region25
  $region24: #{_coupling_forward_jit.1} parent=0 // pred_region
    _
  $region25: #{_coupling_forward_jit.1} parent=0 // pred_fallthru
    _
  // Predicated region
  $region26: #{_coupling_forward_jit.1} parent=0 // pred_check
    _
  $region27: #{_coupling_forward_jit.1} parent=0 // pred_check_branch
    %30 = sbr.rel (0) target = $region29
  $region28: #{_coupling_forward_jit.1} parent=0 // pred_region
    _
  $region29: #{_coupling_forward_jit.1} parent=0 // pred_fallthru
    _
  // Predicated region
  $region30: #{_coupling_forward_jit.1} parent=0 // pred_check
    _
  $region31: #{_coupling_forward_jit.1} parent=0 // pred_check_branch
    %32 = sbr.rel (0) target = $region33
  $region32: #{_coupling_forward_jit.1} parent=0 // pred_region
    _
  $region33: #{_coupling_forward_jit.1} parent=0 // pred_fallthru
    _
  // Predicated region
  $region34: #{_coupling_forward_jit.1} parent=0 // pred_check
    _
  $region35: #{_coupling_forward_jit.1} parent=0 // pred_check_branch
    %34 = sbr.rel (0) target = $region37
  $region36: #{_coupling_forward_jit.1} parent=0 // pred_region
    _
  $region37: #{_coupling_forward_jit.1} parent=0 // pred_fallthru
    _
  // Predicated region
  $region38: #{_coupling_forward_jit.1} parent=0 // pred_check
    _
  $region39: #{_coupling_forward_jit.1} parent=0 // pred_check_branch
    %36 = sbr.rel (0) target = $region41
  $region40: #{_coupling_forward_jit.1} parent=0 // pred_region
    _
  $region41: #{_coupling_forward_jit.1} parent=0 // pred_fallthru
    _
  %v37 = vld [vmem:[%s0] sm:$0xff]
  %v38 = vld [vmem:[%s0 + $0x8] sm:$0xff]
  %v39 = vld [vmem:[%s0 + $0x10] sm:$0xff]
  %v40 = vld [vmem:[%s0 + $0x18] sm:$0xff]
  %v41 = vld [vmem:[%s1] sm:$0xff]
  %v42 = vld [vmem:[%s1 + $0x8] sm:$0xff]
  %v43 = vld [vmem:[%s1 + $0x10] sm:$0xff]
  %v44 = vld [vmem:[%s1 + $0x18] sm:$0xff]
  %v45 = vlaneseq
  %v46 = vshrl.u32 %v45, 7
  %v47 = vadd.s32 %v46, 8
  %v48 = vld [vmem:[%s2] sm:$0x3]
  %v49 = vld [vmem:[%s3] sm:$0x1]
  %51 = vset.pattern.permute.xlu0 0
  %52 = vperm.xlu0 %51, %v37
  %v53 = vpop.permute.xlu0 %52
  %56 = vset.pattern.permute.xlu0 0
  %57 = vperm.xlu0 %56, %v38
  %v58 = vpop.permute.xlu0 %57
  %61 = vset.pattern.permute.xlu0 0
  %62 = vperm.xlu0 %61, %v39
  %v63 = vpop.permute.xlu0 %62
  %66 = vset.pattern.permute.xlu0 0
  %67 = vperm.xlu0 %66, %v40
  %v68 = vpop.permute.xlu0 %67
  %v70 = vlaneseq
  %v71 = vshrl.u32 %v70, 7
  %v72 = vsub.s32 0, %v71
  %v73 = vrot.slane %v48, %v72
  %v74 = vmul.f32 %v53, %v73
  %v75 = vmul.f32 %v58, %v73
  %v76 = vmul.f32 %v63, %v73
  %v77 = vmul.f32 %v68, %v73
  %v79 = vlaneseq
  %v80 = vshrl.u32 %v79, 7
  %v81 = vsub.s32 0, %v80
  %v82 = vrot.slane %v49, %v81
  %v84 = vadd.f32 %v82, %v74
  %v85 = vadd.f32 %v82, %v75
  %v86 = vadd.f32 %v82, %v76
  %v87 = vadd.f32 %v82, %v77
  %88 = vset.pattern.permute.xlu0 1
  %89 = vperm.xlu0 %88, %v37
  %v90 = vpop.permute.xlu0 %89
  %92 = vset.pattern.permute.xlu0 1
  %93 = vperm.xlu0 %92, %v38
  %v94 = vpop.permute.xlu0 %93
  %96 = vset.pattern.permute.xlu0 1
  %97 = vperm.xlu0 %96, %v39
  %v98 = vpop.permute.xlu0 %97
  %100 = vset.pattern.permute.xlu0 1
  %101 = vperm.xlu0 %100, %v40
  %v102 = vpop.permute.xlu0 %101
  %v104 = vlaneseq
  %v105 = vshrl.u32 %v104, 7
  %v106 = vsub.s32 1, %v105
  %v107 = vrot.slane %v48, %v106
  %v108 = vmul.f32 %v90, %v107
  %v109 = vmul.f32 %v94, %v107
  %v110 = vmul.f32 %v98, %v107
  %v111 = vmul.f32 %v102, %v107
  %v112 = vadd.f32 %v84, %v108
  %v113 = vadd.f32 %v85, %v109
  %v114 = vadd.f32 %v86, %v110
  %v115 = vadd.f32 %v87, %v111
  %117 = vset.pattern.permute.xlu0 0
  %118 = vperm.xlu0 %117, %v41
  %v119 = vpop.permute.xlu0 %118
  %122 = vset.pattern.permute.xlu0 0
  %123 = vperm.xlu0 %122, %v42
  %v124 = vpop.permute.xlu0 %123
  %127 = vset.pattern.permute.xlu0 0
  %128 = vperm.xlu0 %127, %v43
  %v129 = vpop.permute.xlu0 %128
  %132 = vset.pattern.permute.xlu0 0
  %133 = vperm.xlu0 %132, %v44
  %v134 = vpop.permute.xlu0 %133
  %v136 = vmul.f32 %v112, %v119
  %v137 = vmul.f32 %v113, %v124
  %v138 = vmul.f32 %v114, %v129
  %v139 = vmul.f32 %v115, %v134
  %vm140 = vcmp.ge.s32.totalorder %v46, 1
  %vm141 = vcmp.ge.s32.totalorder %v47, 1
  %v142 = vsel %vm140, 1, 0
  %v143 = vsel %vm141, 1, 0
  %v144 = vcvt.s32.f32 %v142
  %v145 = vcvt.s32.f32 %v143
  %v146 = vrot.slane %v136, 7
  %v147 = vrot.slane %v137, 7
  %v148 = vrot.slane %v138, 7
  %v149 = vrot.slane %v139, 7
  %vm150 = vcmp.lt.s32.totalorder %v46, 1
  %v151 = vsel %vm150, %v148, %v149
  %v152 = vsel %vm150, %v147, %v148
  %v153 = vsel %vm150, %v146, %v147
  %v154 = vsel %vm150, %v149, %v146
  %156 = vset.pattern.permute.xlu0 0
  %157 = vperm.xlu0 %156, %v144
  %v158 = vpop.permute.xlu0 %157
  %161 = vset.pattern.permute.xlu0 0
  %162 = vperm.xlu0 %161, %v145
  %v163 = vpop.permute.xlu0 %162
  %v165 = vmul.f32 %v154, %v158
  %v166 = vmul.f32 %v153, %v163
  %v167 = vmul.f32 %v152, %v158
  %v168 = vmul.f32 %v151, %v163
  %vm169 = vcmp.lt.s32.totalorder %v46, 15
  %vm170 = vcmp.lt.s32.totalorder %v47, 15
  %v171 = vsel %vm169, 1, 0
  %v172 = vsel %vm170, 1, 0
  %v173 = vcvt.s32.f32 %v171
  %v174 = vcvt.s32.f32 %v172
  %v175 = vrot.slane %v136, 1
  %v176 = vrot.slane %v137, 1
  %v177 = vrot.slane %v138, 1
  %v178 = vrot.slane %v139, 1
  %vm179 = vcmp.lt.s32.totalorder %v46, 7
  %v180 = vsel %vm179, %v177, %v178
  %v181 = vsel %vm179, %v176, %v177
  %v182 = vsel %vm179, %v175, %v176
  %v183 = vsel %vm179, %v178, %v175
  %185 = vset.pattern.permute.xlu0 0
  %186 = vperm.xlu0 %185, %v173
  %v187 = vpop.permute.xlu0 %186
  %190 = vset.pattern.permute.xlu0 0
  %191 = vperm.xlu0 %190, %v174
  %v192 = vpop.permute.xlu0 %191
  %v194 = vmul.f32 %v182, %v187
  %v195 = vmul.f32 %v181, %v192
  %v196 = vmul.f32 %v180, %v187
  %v197 = vmul.f32 %v183, %v192
  %202 = vrot.lane.b32.xlu0 %v136, 32
  %v203 = vpop.permute.xlu0 %202
  %204 = vrot.lane.b32.xlu0 %v137, 32
  %v205 = vpop.permute.xlu0 %204
  %206 = vrot.lane.b32.xlu0 %v138, 32
  %v207 = vpop.permute.xlu0 %206
  %208 = vrot.lane.b32.xlu0 %v139, 32
  %v209 = vpop.permute.xlu0 %208
  %218 = vrot.lane.b32.xlu0 %v194, 64
  %v219 = vpop.permute.xlu0 %218
  %220 = vrot.lane.b32.xlu0 %v195, 64
  %v221 = vpop.permute.xlu0 %220
  %222 = vrot.lane.b32.xlu0 %v196, 64
  %v223 = vpop.permute.xlu0 %222
  %224 = vrot.lane.b32.xlu0 %v197, 64
  %v225 = vpop.permute.xlu0 %224
  %vm230 = vcmask 261120
  %v231 = vsel %vm230, %v165, %v203
  %v232 = vsel %vm230, %v166, %v205
  %v233 = vsel %vm230, %v167, %v207
  %v234 = vsel %vm230, %v168, %v209
  %vm235 = vcmask 523264
  %v236 = vsel %vm235, %v231, %v219
  %v237 = vsel %vm235, %v232, %v221
  %v238 = vsel %vm235, %v233, %v223
  %v239 = vsel %vm235, %v234, %v225
  %v240 = vld [vmem:[%s4] sm:$0xff]
  %v241 = vld [vmem:[%s4 + $0x8] sm:$0xff]
  %v242 = vld [vmem:[%s4 + $0x10] sm:$0xff]
  %v243 = vld [vmem:[%s4 + $0x18] sm:$0xff]
  %v244 = vld [vmem:[%s4 + $0x20] sm:$0xff]
  %v245 = vld [vmem:[%s4 + $0x28] sm:$0xff]
  %v246 = vld [vmem:[%s4 + $0x30] sm:$0xff]
  %v247 = vld [vmem:[%s4 + $0x38] sm:$0xff]
  %v248 = vld [vmem:[%s4 + $0x40] sm:$0xff]
  %v249 = vld [vmem:[%s4 + $0x48] sm:$0xff]
  %v250 = vld [vmem:[%s4 + $0x50] sm:$0xff]
  %v251 = vld [vmem:[%s4 + $0x58] sm:$0xff]
  %v252 = vld [vmem:[%s5] sm:$0x1]
  %v254 = vlaneseq
  %v255 = vshrl.u32 %v254, 7
  %v256 = vsub.s32 0, %v255
  %v257 = vrot.slane %v252, %v256
  %vm259 = vcmask 785408
  %v261 = vsel %vm259, %v236, 0
  %v264 = vsel %vm259, %v237, 0
  %v267 = vsel %vm259, %v238, 0
  %v270 = vsel %vm259, %v239, 0
  %272 = vmatprep.subr.mxu0 0.0
  %273 = vmatpush1.msra.mxu0 %v240
  %274 = vmatprep.subr.mxu0 0.0
  %275 = vmatpush1.msra.mxu0 %v241
  %276 = vmatprep.subr.mxu0 0.0
  %277 = vmatpush1.msra.mxu0 %v242
  %278 = vmatprep.subr.mxu0 0.0
  %279 = vmatpush1.msra.mxu0 %v243
  %280 = vmatprep.subr.mxu0 0.0
  %281 = vmatpush1.msra.mxu0 %v244
  %282 = vmatprep.subr.mxu0 0.0
  %283 = vmatpush1.msra.mxu0 %v245
  %284 = vmatprep.subr.mxu0 0.0
  %285 = vmatpush1.msra.mxu0 %v246
  %286 = vmatprep.subr.mxu0 0.0
  %287 = vmatpush1.msra.mxu0 %v247
  %288 = vmatprep.subr.mxu0 0.0
  %289 = vmatpush1.msra.mxu0 %v248
  %290 = vmatprep.subr.mxu0 0.0
  %291 = vmatpush1.msra.mxu0 %v249
  %292 = vmatprep.subr.mxu0 0.0
  %293 = vmatpush1.msra.mxu0 %v250
  %294 = vmatprep.subr.mxu0 0.0
  %295 = vmatpush1.msra.mxu0 %v251
  %296 = vmatprep.subr.mxu0 0.0
  %297 = vmatpush1.msra.mxu0 0.0
  %298 = vmatprep.subr.mxu0 0.0
  %299 = vmatpush1.msra.mxu0 0.0
  %300 = vmatprep.subr.mxu0 0.0
  %301 = vmatpush1.msra.mxu0 0.0
  %302 = vmatprep.subr.mxu0 0.0
  %303 = vmatpush1.msra.mxu0 0.0
  %304 = vmatprep.subr.mxu0 0.0
  %305 = vmatpush1.msra.mxu0 0.0
  %306 = vmatprep.subr.mxu0 0.0
  %307 = vmatpush1.msra.mxu0 0.0
  %308 = vmatprep.subr.mxu0 0.0
  %309 = vmatpush1.msra.mxu0 0.0
  %310 = vmatprep.subr.mxu0 0.0
  %311 = vmatpush1.msra.mxu0 0.0
  %312 = vmatprep.subr.mxu0 0.0
  %313 = vmatpush1.msra.mxu0 0.0
  %314 = vmatprep.subr.mxu0 0.0
  %315 = vmatpush1.msra.mxu0 0.0
  %316 = vmatprep.subr.mxu0 0.0
  %317 = vmatpush1.msra.mxu0 0.0
  %318 = vmatprep.subr.mxu0 0.0
  %319 = vmatpush1.msra.mxu0 0.0
  %320 = vmatprep.subr.mxu0 0.0
  %321 = vmatpush1.msra.mxu0 0.0
  %322 = vmatprep.subr.mxu0 0.0
  %323 = vmatpush1.msra.mxu0 0.0
  %324 = vmatprep.subr.mxu0 0.0
  %325 = vmatpush1.msra.mxu0 0.0
  %326 = vmatprep.subr.mxu0 0.0
  %327 = vmatpush1.msra.mxu0 0.0
  %328 = vmatprep.subr.mxu0 0.0
  %329 = vmatpush1.msra.mxu0 0.0
  %330 = vmatprep.subr.mxu0 0.0
  %331 = vmatpush1.msra.mxu0 0.0
  %332 = vmatprep.subr.mxu0 0.0
  %333 = vmatpush1.msra.mxu0 0.0
  %334 = vmatprep.subr.mxu0 0.0
  %335 = vmatpush1.msra.mxu0 0.0
  %336 = vmatprep.mubr.f32.mxu0 0.0
  %337 = vmatmul.mubr.f32.gmra.mrb[0].mxu0 %v261
  %v338 = vpop.f32.mrb[0].mxu0
  %v339 = vadd.f32 %v257, %v338
  %v340 = vpop.f32.mrb[0].mxu0
  %341 = vmatprep.mubr.f32.mxu0 0.0
  %342 = vmatmul.mubr.f32.gmra.mrb[0].mxu0 %v264
  %v343 = vpop.f32.mrb[0].mxu0
  %v344 = vadd.f32 %v257, %v343
  %v345 = vpop.f32.mrb[0].mxu0
  %346 = vmatprep.mubr.f32.mxu0 0.0
  %347 = vmatmul.mubr.f32.gmra.mrb[0].mxu0 %v267
  %v348 = vpop.f32.mrb[0].mxu0
  %v349 = vadd.f32 %v257, %v348
  %v350 = vpop.f32.mrb[0].mxu0
  %351 = vmatprep.mubr.f32.mxu0 0.0
  %352 = vmatmul.mubr.f32.gmra.mrb[0].mxu0 %v270
  %v353 = vpop.f32.mrb[0].mxu0
  %v354 = vadd.f32 %v257, %v353
  %v355 = vpop.f32.mrb[0].mxu0
  %356 = vdwg.mxu0
  %v357 = vtanh.pop %v339
  %v358 = vtanh.pop %v344
  %v359 = vtanh.pop %v349
  %v360 = vtanh.pop %v354
  %v361 = vxor.u32 %v339, 2147483648
  %v362 = vxor.u32 %v344, 2147483648
  %v363 = vxor.u32 %v349, 2147483648
  %v364 = vxor.u32 %v354, 2147483648
  %v365 = vmul.f32 %v361, 1.442695
  %v366 = vpow.pop %v365
  %v367 = vmul.f32 %v362, 1.442695
  %v368 = vpow.pop %v367
  %v369 = vmul.f32 %v363, 1.442695
  %v370 = vpow.pop %v369
  %v371 = vmul.f32 %v364, 1.442695
  %v372 = vpow.pop %v371
  %v373 = vadd.f32 %v366, 1.0
  %v374 = vadd.f32 %v368, 1.0
  %v375 = vadd.f32 %v370, 1.0
  %v376 = vadd.f32 %v372, 1.0
  %v377 = vrcp.pop %v373
  %v378 = vmul.f32 1.0, %v377
  %v379 = vrcp.pop %v374
  %v380 = vmul.f32 1.0, %v379
  %v381 = vrcp.pop %v375
  %v382 = vmul.f32 1.0, %v381
  %v383 = vrcp.pop %v376
  %v384 = vmul.f32 1.0, %v383
  %389 = vrot.lane.b32.xlu0 %v378, 96
  %v390 = vpop.permute.xlu0 %389
  %391 = vrot.lane.b32.xlu0 %v380, 96
  %v392 = vpop.permute.xlu0 %391
  %393 = vrot.lane.b32.xlu0 %v382, 96
  %v394 = vpop.permute.xlu0 %393
  %395 = vrot.lane.b32.xlu0 %v384, 96
  %v396 = vpop.permute.xlu0 %395
  %v401 = vmul.f32 %v357, %v390
  %v402 = vmul.f32 %v358, %v392
  %v403 = vmul.f32 %v359, %v394
  %v404 = vmul.f32 %v360, %v396
  %v405 = vld [vmem:[%s6] sm:$0xff]
  %v406 = vld [vmem:[%s6 + $0x8] sm:$0xff]
  %v407 = vld [vmem:[%s6 + $0x10] sm:$0xff]
  %v408 = vld [vmem:[%s6 + $0x18] sm:$0xff]
  %v409 = vld [vmem:[%s7] sm:$0x1]
  %v411 = vlaneseq
  %v412 = vshrl.u32 %v411, 7
  %v413 = vsub.s32 0, %v412
  %v414 = vrot.slane %v409, %v413
  %v417 = vsel %vm230, %v401, 0
  %v420 = vsel %vm230, %v402, 0
  %v423 = vsel %vm230, %v403, 0
  %v426 = vsel %vm230, %v404, 0
  %428 = vmatprep.subr.mxu0 0.0
  %429 = vmatpush1.msra.mxu0 %v405
  %430 = vmatprep.subr.mxu0 0.0
  %431 = vmatpush1.msra.mxu0 %v406
  %432 = vmatprep.subr.mxu0 0.0
  %433 = vmatpush1.msra.mxu0 %v407
  %434 = vmatprep.subr.mxu0 0.0
  %435 = vmatpush1.msra.mxu0 %v408
  %436 = vmatprep.subr.mxu0 0.0
  %437 = vmatpush1.msra.mxu0 0.0
  %438 = vmatprep.subr.mxu0 0.0
  %439 = vmatpush1.msra.mxu0 0.0
  %440 = vmatprep.subr.mxu0 0.0
  %441 = vmatpush1.msra.mxu0 0.0
  %442 = vmatprep.subr.mxu0 0.0
  %443 = vmatpush1.msra.mxu0 0.0
  %444 = vmatprep.subr.mxu0 0.0
  %445 = vmatpush1.msra.mxu0 0.0
  %446 = vmatprep.subr.mxu0 0.0
  %447 = vmatpush1.msra.mxu0 0.0
  %448 = vmatprep.subr.mxu0 0.0
  %449 = vmatpush1.msra.mxu0 0.0
  %450 = vmatprep.subr.mxu0 0.0
  %451 = vmatpush1.msra.mxu0 0.0
  %452 = vmatprep.subr.mxu0 0.0
  %453 = vmatpush1.msra.mxu0 0.0
  %454 = vmatprep.subr.mxu0 0.0
  %455 = vmatpush1.msra.mxu0 0.0
  %456 = vmatprep.subr.mxu0 0.0
  %457 = vmatpush1.msra.mxu0 0.0
  %458 = vmatprep.subr.mxu0 0.0
  %459 = vmatpush1.msra.mxu0 0.0
  %460 = vmatprep.subr.mxu0 0.0
  %461 = vmatpush1.msra.mxu0 0.0
  %462 = vmatprep.subr.mxu0 0.0
  %463 = vmatpush1.msra.mxu0 0.0
  %464 = vmatprep.subr.mxu0 0.0
  %465 = vmatpush1.msra.mxu0 0.0
  %466 = vmatprep.subr.mxu0 0.0
  %467 = vmatpush1.msra.mxu0 0.0
  %468 = vmatprep.subr.mxu0 0.0
  %469 = vmatpush1.msra.mxu0 0.0
  %470 = vmatprep.subr.mxu0 0.0
  %471 = vmatpush1.msra.mxu0 0.0
  %472 = vmatprep.subr.mxu0 0.0
  %473 = vmatpush1.msra.mxu0 0.0
  %474 = vmatprep.subr.mxu0 0.0
  %475 = vmatpush1.msra.mxu0 0.0
  %476 = vmatprep.subr.mxu0 0.0
  %477 = vmatpush1.msra.mxu0 0.0
  %478 = vmatprep.subr.mxu0 0.0
  %479 = vmatpush1.msra.mxu0 0.0
  %480 = vmatprep.subr.mxu0 0.0
  %481 = vmatpush1.msra.mxu0 0.0
  %482 = vmatprep.subr.mxu0 0.0
  %483 = vmatpush1.msra.mxu0 0.0
  %484 = vmatprep.subr.mxu0 0.0
  %485 = vmatpush1.msra.mxu0 0.0
  %486 = vmatprep.subr.mxu0 0.0
  %487 = vmatpush1.msra.mxu0 0.0
  %488 = vmatprep.subr.mxu0 0.0
  %489 = vmatpush1.msra.mxu0 0.0
  %490 = vmatprep.subr.mxu0 0.0
  %491 = vmatpush1.msra.mxu0 0.0
  %492 = vmatprep.mubr.f32.mxu0 0.0
  %493 = vmatmul.mubr.f32.gmra.mrb[0].mxu0 %v417
  %v494 = vpop.f32.mrb[0].mxu0
  %v495 = vadd.f32 %v414, %v494
  %v496 = vpop.f32.mrb[0].mxu0
  %497 = vmatprep.mubr.f32.mxu0 0.0
  %498 = vmatmul.mubr.f32.gmra.mrb[0].mxu0 %v420
  %v499 = vpop.f32.mrb[0].mxu0
  %v500 = vadd.f32 %v414, %v499
  %v501 = vpop.f32.mrb[0].mxu0
  %502 = vmatprep.mubr.f32.mxu0 0.0
  %503 = vmatmul.mubr.f32.gmra.mrb[0].mxu0 %v423
  %v504 = vpop.f32.mrb[0].mxu0
  %v505 = vadd.f32 %v414, %v504
  %v506 = vpop.f32.mrb[0].mxu0
  %507 = vmatprep.mubr.f32.mxu0 0.0
  %508 = vmatmul.mubr.f32.gmra.mrb[0].mxu0 %v426
  %v509 = vpop.f32.mrb[0].mxu0
  %v510 = vadd.f32 %v414, %v509
  %v511 = vpop.f32.mrb[0].mxu0
  %512 = vdwg.mxu0
  %v513 = vadd.f32 %v136, %v495
  %v514 = vadd.f32 %v137, %v500
  %v515 = vadd.f32 %v138, %v505
  %v516 = vadd.f32 %v139, %v510
  %v517 = vmul.f32 %v513, %v119
  %v518 = vmul.f32 %v514, %v124
  %v519 = vmul.f32 %v515, %v129
  %v520 = vmul.f32 %v516, %v134
  %v521 = vrot.slane %v517, 7
  %v522 = vrot.slane %v518, 7
  %v523 = vrot.slane %v519, 7
  %v524 = vrot.slane %v520, 7
  %v525 = vsel %vm150, %v523, %v524
  %v526 = vsel %vm150, %v522, %v523
  %v527 = vsel %vm150, %v521, %v522
  %v528 = vsel %vm150, %v524, %v521
  %v529 = vmul.f32 %v528, %v158
  %v530 = vmul.f32 %v527, %v163
  %v531 = vmul.f32 %v526, %v158
  %v532 = vmul.f32 %v525, %v163
  %v533 = vrot.slane %v517, 1
  %v534 = vrot.slane %v518, 1
  %v535 = vrot.slane %v519, 1
  %v536 = vrot.slane %v520, 1
  %v537 = vsel %vm179, %v535, %v536
  %v538 = vsel %vm179, %v534, %v535
  %v539 = vsel %vm179, %v533, %v534
  %v540 = vsel %vm179, %v536, %v533
  %v541 = vmul.f32 %v539, %v187
  %v542 = vmul.f32 %v538, %v192
  %v543 = vmul.f32 %v537, %v187
  %v544 = vmul.f32 %v540, %v192
  %549 = vrot.lane.b32.xlu0 %v517, 32
  %v550 = vpop.permute.xlu0 %549
  %551 = vrot.lane.b32.xlu0 %v518, 32
  %v552 = vpop.permute.xlu0 %551
  %553 = vrot.lane.b32.xlu0 %v519, 32
  %v554 = vpop.permute.xlu0 %553
  %555 = vrot.lane.b32.xlu0 %v520, 32
  %v556 = vpop.permute.xlu0 %555
  %565 = vrot.lane.b32.xlu0 %v541, 64
  %v566 = vpop.permute.xlu0 %565
  %567 = vrot.lane.b32.xlu0 %v542, 64
  %v568 = vpop.permute.xlu0 %567
  %569 = vrot.lane.b32.xlu0 %v543, 64
  %v570 = vpop.permute.xlu0 %569
  %571 = vrot.lane.b32.xlu0 %v544, 64
  %v572 = vpop.permute.xlu0 %571
  %v577 = vsel %vm230, %v529, %v550
  %v578 = vsel %vm230, %v530, %v552
  %v579 = vsel %vm230, %v531, %v554
  %v580 = vsel %vm230, %v532, %v556
  %v581 = vsel %vm235, %v577, %v566
  %v582 = vsel %vm235, %v578, %v568
  %v583 = vsel %vm235, %v579, %v570
  %v584 = vsel %vm235, %v580, %v572
  %s585 = scalar_lea.vmem %s4, 96
  %v586 = vld [vmem:[%s585] sm:$0xff]
  %v587 = vld [vmem:[%s585 + $0x8] sm:$0xff]
  %v588 = vld [vmem:[%s585 + $0x10] sm:$0xff]
  %v589 = vld [vmem:[%s585 + $0x18] sm:$0xff]
  %v590 = vld [vmem:[%s585 + $0x20] sm:$0xff]
  %v591 = vld [vmem:[%s585 + $0x28] sm:$0xff]
  %v592 = vld [vmem:[%s585 + $0x30] sm:$0xff]
  %v593 = vld [vmem:[%s585 + $0x38] sm:$0xff]
  %v594 = vld [vmem:[%s585 + $0x40] sm:$0xff]
  %v595 = vld [vmem:[%s585 + $0x48] sm:$0xff]
  %v596 = vld [vmem:[%s585 + $0x50] sm:$0xff]
  %v597 = vld [vmem:[%s585 + $0x58] sm:$0xff]
  %s598 = scalar_lea.vmem %s5, 1
  %v599 = vld [vmem:[%s598] sm:$0x1]
  %v601 = vlaneseq
  %v602 = vshrl.u32 %v601, 7
  %v603 = vsub.s32 0, %v602
  %v604 = vrot.slane %v599, %v603
  %v607 = vsel %vm259, %v581, 0
  %v610 = vsel %vm259, %v582, 0
  %v613 = vsel %vm259, %v583, 0
  %v616 = vsel %vm259, %v584, 0
  %618 = vmatprep.subr.mxu0 0.0
  %619 = vmatpush1.msra.mxu0 %v586
  %620 = vmatprep.subr.mxu0 0.0
  %621 = vmatpush1.msra.mxu0 %v587
  %622 = vmatprep.subr.mxu0 0.0
  %623 = vmatpush1.msra.mxu0 %v588
  %624 = vmatprep.subr.mxu0 0.0
  %625 = vmatpush1.msra.mxu0 %v589
  %626 = vmatprep.subr.mxu0 0.0
  %627 = vmatpush1.msra.mxu0 %v590
  %628 = vmatprep.subr.mxu0 0.0
  %629 = vmatpush1.msra.mxu0 %v591
  %630 = vmatprep.subr.mxu0 0.0
  %631 = vmatpush1.msra.mxu0 %v592
  %632 = vmatprep.subr.mxu0 0.0
  %633 = vmatpush1.msra.mxu0 %v593
  %634 = vmatprep.subr.mxu0 0.0
  %635 = vmatpush1.msra.mxu0 %v594
  %636 = vmatprep.subr.mxu0 0.0
  %637 = vmatpush1.msra.mxu0 %v595
  %638 = vmatprep.subr.mxu0 0.0
  %639 = vmatpush1.msra.mxu0 %v596
  %640 = vmatprep.subr.mxu0 0.0
  %641 = vmatpush1.msra.mxu0 %v597
  %642 = vmatprep.subr.mxu0 0.0
  %643 = vmatpush1.msra.mxu0 0.0
  %644 = vmatprep.subr.mxu0 0.0
  %645 = vmatpush1.msra.mxu0 0.0
  %646 = vmatprep.subr.mxu0 0.0
  %647 = vmatpush1.msra.mxu0 0.0
  %648 = vmatprep.subr.mxu0 0.0
  %649 = vmatpush1.msra.mxu0 0.0
  %650 = vmatprep.subr.mxu0 0.0
  %651 = vmatpush1.msra.mxu0 0.0
  %652 = vmatprep.subr.mxu0 0.0
  %653 = vmatpush1.msra.mxu0 0.0
  %654 = vmatprep.subr.mxu0 0.0
  %655 = vmatpush1.msra.mxu0 0.0
  %656 = vmatprep.subr.mxu0 0.0
  %657 = vmatpush1.msra.mxu0 0.0
  %658 = vmatprep.subr.mxu0 0.0
  %659 = vmatpush1.msra.mxu0 0.0
  %660 = vmatprep.subr.mxu0 0.0
  %661 = vmatpush1.msra.mxu0 0.0
  %662 = vmatprep.subr.mxu0 0.0
  %663 = vmatpush1.msra.mxu0 0.0
  %664 = vmatprep.subr.mxu0 0.0
  %665 = vmatpush1.msra.mxu0 0.0
  %666 = vmatprep.subr.mxu0 0.0
  %667 = vmatpush1.msra.mxu0 0.0
  %668 = vmatprep.subr.mxu0 0.0
  %669 = vmatpush1.msra.mxu0 0.0
  %670 = vmatprep.subr.mxu0 0.0
  %671 = vmatpush1.msra.mxu0 0.0
  %672 = vmatprep.subr.mxu0 0.0
  %673 = vmatpush1.msra.mxu0 0.0
  %674 = vmatprep.subr.mxu0 0.0
  %675 = vmatpush1.msra.mxu0 0.0
  %676 = vmatprep.subr.mxu0 0.0
  %677 = vmatpush1.msra.mxu0 0.0
  %678 = vmatprep.subr.mxu0 0.0
  %679 = vmatpush1.msra.mxu0 0.0
  %680 = vmatprep.subr.mxu0 0.0
  %681 = vmatpush1.msra.mxu0 0.0
  %682 = vmatprep.mubr.f32.mxu0 0.0
  %683 = vmatmul.mubr.f32.gmra.mrb[0].mxu0 %v607
  %v684 = vpop.f32.mrb[0].mxu0
  %v685 = vadd.f32 %v604, %v684
  %v686 = vpop.f32.mrb[0].mxu0
  %687 = vmatprep.mubr.f32.mxu0 0.0
  %688 = vmatmul.mubr.f32.gmra.mrb[0].mxu0 %v610
  %v689 = vpop.f32.mrb[0].mxu0
  %v690 = vadd.f32 %v604, %v689
  %v691 = vpop.f32.mrb[0].mxu0
  %692 = vmatprep.mubr.f32.mxu0 0.0
  %693 = vmatmul.mubr.f32.gmra.mrb[0].mxu0 %v613
  %v694 = vpop.f32.mrb[0].mxu0
  %v695 = vadd.f32 %v604, %v694
  %v696 = vpop.f32.mrb[0].mxu0
  %697 = vmatprep.mubr.f32.mxu0 0.0
  %698 = vmatmul.mubr.f32.gmra.mrb[0].mxu0 %v616
  %v699 = vpop.f32.mrb[0].mxu0
  %v700 = vadd.f32 %v604, %v699
  %v701 = vpop.f32.mrb[0].mxu0
  %702 = vdwg.mxu0
  %v703 = vtanh.pop %v685
  %v704 = vtanh.pop %v690
  %v705 = vtanh.pop %v695
  %v706 = vtanh.pop %v700
  %v707 = vxor.u32 %v685, 2147483648
  %v708 = vxor.u32 %v690, 2147483648
  %v709 = vxor.u32 %v695, 2147483648
  %v710 = vxor.u32 %v700, 2147483648
  %v711 = vmul.f32 %v707, 1.442695
  %v712 = vpow.pop %v711
  %v713 = vmul.f32 %v708, 1.442695
  %v714 = vpow.pop %v713
  %v715 = vmul.f32 %v709, 1.442695
  %v716 = vpow.pop %v715
  %v717 = vmul.f32 %v710, 1.442695
  %v718 = vpow.pop %v717
  %v719 = vadd.f32 %v712, 1.0
  %v720 = vadd.f32 %v714, 1.0
  %v721 = vadd.f32 %v716, 1.0
  %v722 = vadd.f32 %v718, 1.0
  %v723 = vrcp.pop %v719
  %v724 = vmul.f32 1.0, %v723
  %v725 = vrcp.pop %v720
  %v726 = vmul.f32 1.0, %v725
  %v727 = vrcp.pop %v721
  %v728 = vmul.f32 1.0, %v727
  %v729 = vrcp.pop %v722
  %v730 = vmul.f32 1.0, %v729
  %735 = vrot.lane.b32.xlu0 %v724, 96
  %v736 = vpop.permute.xlu0 %735
  %737 = vrot.lane.b32.xlu0 %v726, 96
  %v738 = vpop.permute.xlu0 %737
  %739 = vrot.lane.b32.xlu0 %v728, 96
  %v740 = vpop.permute.xlu0 %739
  %741 = vrot.lane.b32.xlu0 %v730, 96
  %v742 = vpop.permute.xlu0 %741
  %v747 = vmul.f32 %v703, %v736
  %v748 = vmul.f32 %v704, %v738
  %v749 = vmul.f32 %v705, %v740
  %v750 = vmul.f32 %v706, %v742
  %s751 = scalar_lea.vmem %s6, 32
  %v752 = vld [vmem:[%s751] sm:$0xff]
  %v753 = vld [vmem:[%s751 + $0x8] sm:$0xff]
  %v754 = vld [vmem:[%s751 + $0x10] sm:$0xff]
  %v755 = vld [vmem:[%s751 + $0x18] sm:$0xff]
  %s756 = scalar_lea.vmem %s7, 1
  %v757 = vld [vmem:[%s756] sm:$0x1]
  %v759 = vlaneseq
  %v760 = vshrl.u32 %v759, 7
  %v761 = vsub.s32 0, %v760
  %v762 = vrot.slane %v757, %v761
  %v765 = vsel %vm230, %v747, 0
  %v768 = vsel %vm230, %v748, 0
  %v771 = vsel %vm230, %v749, 0
  %v774 = vsel %vm230, %v750, 0
  %776 = vmatprep.subr.mxu0 0.0
  %777 = vmatpush1.msra.mxu0 %v752
  %778 = vmatprep.subr.mxu0 0.0
  %779 = vmatpush1.msra.mxu0 %v753
  %780 = vmatprep.subr.mxu0 0.0
  %781 = vmatpush1.msra.mxu0 %v754
  %782 = vmatprep.subr.mxu0 0.0
  %783 = vmatpush1.msra.mxu0 %v755
  %784 = vmatprep.subr.mxu0 0.0
  %785 = vmatpush1.msra.mxu0 0.0
  %786 = vmatprep.subr.mxu0 0.0
  %787 = vmatpush1.msra.mxu0 0.0
  %788 = vmatprep.subr.mxu0 0.0
  %789 = vmatpush1.msra.mxu0 0.0
  %790 = vmatprep.subr.mxu0 0.0
  %791 = vmatpush1.msra.mxu0 0.0
  %792 = vmatprep.subr.mxu0 0.0
  %793 = vmatpush1.msra.mxu0 0.0
  %794 = vmatprep.subr.mxu0 0.0
  %795 = vmatpush1.msra.mxu0 0.0
  %796 = vmatprep.subr.mxu0 0.0
  %797 = vmatpush1.msra.mxu0 0.0
  %798 = vmatprep.subr.mxu0 0.0
  %799 = vmatpush1.msra.mxu0 0.0
  %800 = vmatprep.subr.mxu0 0.0
  %801 = vmatpush1.msra.mxu0 0.0
  %802 = vmatprep.subr.mxu0 0.0
  %803 = vmatpush1.msra.mxu0 0.0
  %804 = vmatprep.subr.mxu0 0.0
  %805 = vmatpush1.msra.mxu0 0.0
  %806 = vmatprep.subr.mxu0 0.0
  %807 = vmatpush1.msra.mxu0 0.0
  %808 = vmatprep.subr.mxu0 0.0
  %809 = vmatpush1.msra.mxu0 0.0
  %810 = vmatprep.subr.mxu0 0.0
  %811 = vmatpush1.msra.mxu0 0.0
  %812 = vmatprep.subr.mxu0 0.0
  %813 = vmatpush1.msra.mxu0 0.0
  %814 = vmatprep.subr.mxu0 0.0
  %815 = vmatpush1.msra.mxu0 0.0
  %816 = vmatprep.subr.mxu0 0.0
  %817 = vmatpush1.msra.mxu0 0.0
  %818 = vmatprep.subr.mxu0 0.0
  %819 = vmatpush1.msra.mxu0 0.0
  %820 = vmatprep.subr.mxu0 0.0
  %821 = vmatpush1.msra.mxu0 0.0
  %822 = vmatprep.subr.mxu0 0.0
  %823 = vmatpush1.msra.mxu0 0.0
  %824 = vmatprep.subr.mxu0 0.0
  %825 = vmatpush1.msra.mxu0 0.0
  %826 = vmatprep.subr.mxu0 0.0
  %827 = vmatpush1.msra.mxu0 0.0
  %828 = vmatprep.subr.mxu0 0.0
  %829 = vmatpush1.msra.mxu0 0.0
  %830 = vmatprep.subr.mxu0 0.0
  %831 = vmatpush1.msra.mxu0 0.0
  %832 = vmatprep.subr.mxu0 0.0
  %833 = vmatpush1.msra.mxu0 0.0
  %834 = vmatprep.subr.mxu0 0.0
  %835 = vmatpush1.msra.mxu0 0.0
  %836 = vmatprep.subr.mxu0 0.0
  %837 = vmatpush1.msra.mxu0 0.0
  %838 = vmatprep.subr.mxu0 0.0
  %839 = vmatpush1.msra.mxu0 0.0
  %840 = vmatprep.mubr.f32.mxu0 0.0
  %841 = vmatmul.mubr.f32.gmra.mrb[0].mxu0 %v765
  %v842 = vpop.f32.mrb[0].mxu0
  %v843 = vadd.f32 %v762, %v842
  %v844 = vpop.f32.mrb[0].mxu0
  %845 = vmatprep.mubr.f32.mxu0 0.0
  %846 = vmatmul.mubr.f32.gmra.mrb[0].mxu0 %v768
  %v847 = vpop.f32.mrb[0].mxu0
  %v848 = vadd.f32 %v762, %v847
  %v849 = vpop.f32.mrb[0].mxu0
  %850 = vmatprep.mubr.f32.mxu0 0.0
  %851 = vmatmul.mubr.f32.gmra.mrb[0].mxu0 %v771
  %v852 = vpop.f32.mrb[0].mxu0
  %v853 = vadd.f32 %v762, %v852
  %v854 = vpop.f32.mrb[0].mxu0
  %855 = vmatprep.mubr.f32.mxu0 0.0
  %856 = vmatmul.mubr.f32.gmra.mrb[0].mxu0 %v774
  %v857 = vpop.f32.mrb[0].mxu0
  %v858 = vadd.f32 %v762, %v857
  %v859 = vpop.f32.mrb[0].mxu0
  %860 = vdwg.mxu0
  %v861 = vadd.f32 %v495, %v843
  %v862 = vadd.f32 %v500, %v848
  %v863 = vadd.f32 %v505, %v853
  %v864 = vadd.f32 %v510, %v858
  %v865 = vadd.f32 %v517, %v843
  %v866 = vadd.f32 %v518, %v848
  %v867 = vadd.f32 %v519, %v853
  %v868 = vadd.f32 %v520, %v858
  %v869 = vmul.f32 %v865, %v119
  %v870 = vmul.f32 %v866, %v124
  %v871 = vmul.f32 %v867, %v129
  %v872 = vmul.f32 %v868, %v134
  %v873 = vrot.slane %v869, 7
  %v874 = vrot.slane %v870, 7
  %v875 = vrot.slane %v871, 7
  %v876 = vrot.slane %v872, 7
  %v877 = vsel %vm150, %v875, %v876
  %v878 = vsel %vm150, %v874, %v875
  %v879 = vsel %vm150, %v873, %v874
  %v880 = vsel %vm150, %v876, %v873
  %v881 = vmul.f32 %v880, %v158
  %v882 = vmul.f32 %v879, %v163
  %v883 = vmul.f32 %v878, %v158
  %v884 = vmul.f32 %v877, %v163
  %v885 = vrot.slane %v869, 1
  %v886 = vrot.slane %v870, 1
  %v887 = vrot.slane %v871, 1
  %v888 = vrot.slane %v872, 1
  %v889 = vsel %vm179, %v887, %v888
  %v890 = vsel %vm179, %v886, %v887
  %v891 = vsel %vm179, %v885, %v886
  %v892 = vsel %vm179, %v888, %v885
  %v893 = vmul.f32 %v891, %v187
  %v894 = vmul.f32 %v890, %v192
  %v895 = vmul.f32 %v889, %v187
  %v896 = vmul.f32 %v892, %v192
  %901 = vrot.lane.b32.xlu0 %v869, 32
  %v902 = vpop.permute.xlu0 %901
  %903 = vrot.lane.b32.xlu0 %v870, 32
  %v904 = vpop.permute.xlu0 %903
  %905 = vrot.lane.b32.xlu0 %v871, 32
  %v906 = vpop.permute.xlu0 %905
  %907 = vrot.lane.b32.xlu0 %v872, 32
  %v908 = vpop.permute.xlu0 %907
  %917 = vrot.lane.b32.xlu0 %v893, 64
  %v918 = vpop.permute.xlu0 %917
  %919 = vrot.lane.b32.xlu0 %v894, 64
  %v920 = vpop.permute.xlu0 %919
  %921 = vrot.lane.b32.xlu0 %v895, 64
  %v922 = vpop.permute.xlu0 %921
  %923 = vrot.lane.b32.xlu0 %v896, 64
  %v924 = vpop.permute.xlu0 %923
  %v929 = vsel %vm230, %v881, %v902
  %v930 = vsel %vm230, %v882, %v904
  %v931 = vsel %vm230, %v883, %v906
  %v932 = vsel %vm230, %v884, %v908
  %v933 = vsel %vm235, %v929, %v918
  %v934 = vsel %vm235, %v930, %v920
  %v935 = vsel %vm235, %v931, %v922
  %v936 = vsel %vm235, %v932, %v924
  %s937 = scalar_lea.vmem %s4, 192
  %v938 = vld [vmem:[%s937] sm:$0xff]
  %v939 = vld [vmem:[%s937 + $0x8] sm:$0xff]
  %v940 = vld [vmem:[%s937 + $0x10] sm:$0xff]
  %v941 = vld [vmem:[%s937 + $0x18] sm:$0xff]
  %v942 = vld [vmem:[%s937 + $0x20] sm:$0xff]
  %v943 = vld [vmem:[%s937 + $0x28] sm:$0xff]
  %v944 = vld [vmem:[%s937 + $0x30] sm:$0xff]
  %v945 = vld [vmem:[%s937 + $0x38] sm:$0xff]
  %v946 = vld [vmem:[%s937 + $0x40] sm:$0xff]
  %v947 = vld [vmem:[%s937 + $0x48] sm:$0xff]
  %v948 = vld [vmem:[%s937 + $0x50] sm:$0xff]
  %v949 = vld [vmem:[%s937 + $0x58] sm:$0xff]
  %s950 = scalar_lea.vmem %s5, 2
  %v951 = vld [vmem:[%s950] sm:$0x1]
  %v953 = vlaneseq
  %v954 = vshrl.u32 %v953, 7
  %v955 = vsub.s32 0, %v954
  %v956 = vrot.slane %v951, %v955
  %v959 = vsel %vm259, %v933, 0
  %v962 = vsel %vm259, %v934, 0
  %v965 = vsel %vm259, %v935, 0
  %v968 = vsel %vm259, %v936, 0
  %970 = vmatprep.subr.mxu0 0.0
  %971 = vmatpush1.msra.mxu0 %v938
  %972 = vmatprep.subr.mxu0 0.0
  %973 = vmatpush1.msra.mxu0 %v939
  %974 = vmatprep.subr.mxu0 0.0
  %975 = vmatpush1.msra.mxu0 %v940
  %976 = vmatprep.subr.mxu0 0.0
  %977 = vmatpush1.msra.mxu0 %v941
  %978 = vmatprep.subr.mxu0 0.0
  %979 = vmatpush1.msra.mxu0 %v942
  %980 = vmatprep.subr.mxu0 0.0
  %981 = vmatpush1.msra.mxu0 %v943
  %982 = vmatprep.subr.mxu0 0.0
  %983 = vmatpush1.msra.mxu0 %v944
  %984 = vmatprep.subr.mxu0 0.0
  %985 = vmatpush1.msra.mxu0 %v945
  %986 = vmatprep.subr.mxu0 0.0
  %987 = vmatpush1.msra.mxu0 %v946
  %988 = vmatprep.subr.mxu0 0.0
  %989 = vmatpush1.msra.mxu0 %v947
  %990 = vmatprep.subr.mxu0 0.0
  %991 = vmatpush1.msra.mxu0 %v948
  %992 = vmatprep.subr.mxu0 0.0
  %993 = vmatpush1.msra.mxu0 %v949
  %994 = vmatprep.subr.mxu0 0.0
  %995 = vmatpush1.msra.mxu0 0.0
  %996 = vmatprep.subr.mxu0 0.0
  %997 = vmatpush1.msra.mxu0 0.0
  %998 = vmatprep.subr.mxu0 0.0
  %999 = vmatpush1.msra.mxu0 0.0
  %1000 = vmatprep.subr.mxu0 0.0
  %1001 = vmatpush1.msra.mxu0 0.0
  %1002 = vmatprep.subr.mxu0 0.0
  %1003 = vmatpush1.msra.mxu0 0.0
  %1004 = vmatprep.subr.mxu0 0.0
  %1005 = vmatpush1.msra.mxu0 0.0
  %1006 = vmatprep.subr.mxu0 0.0
  %1007 = vmatpush1.msra.mxu0 0.0
  %1008 = vmatprep.subr.mxu0 0.0
  %1009 = vmatpush1.msra.mxu0 0.0
  %1010 = vmatprep.subr.mxu0 0.0
  %1011 = vmatpush1.msra.mxu0 0.0
  %1012 = vmatprep.subr.mxu0 0.0
  %1013 = vmatpush1.msra.mxu0 0.0
  %1014 = vmatprep.subr.mxu0 0.0
  %1015 = vmatpush1.msra.mxu0 0.0
  %1016 = vmatprep.subr.mxu0 0.0
  %1017 = vmatpush1.msra.mxu0 0.0
  %1018 = vmatprep.subr.mxu0 0.0
  %1019 = vmatpush1.msra.mxu0 0.0
  %1020 = vmatprep.subr.mxu0 0.0
  %1021 = vmatpush1.msra.mxu0 0.0
  %1022 = vmatprep.subr.mxu0 0.0
  %1023 = vmatpush1.msra.mxu0 0.0
  %1024 = vmatprep.subr.mxu0 0.0
  %1025 = vmatpush1.msra.mxu0 0.0
  %1026 = vmatprep.subr.mxu0 0.0
  %1027 = vmatpush1.msra.mxu0 0.0
  %1028 = vmatprep.subr.mxu0 0.0
  %1029 = vmatpush1.msra.mxu0 0.0
  %1030 = vmatprep.subr.mxu0 0.0
  %1031 = vmatpush1.msra.mxu0 0.0
  %1032 = vmatprep.subr.mxu0 0.0
  %1033 = vmatpush1.msra.mxu0 0.0
  %1034 = vmatprep.mubr.f32.mxu0 0.0
  %1035 = vmatmul.mubr.f32.gmra.mrb[0].mxu0 %v959
  %v1036 = vpop.f32.mrb[0].mxu0
  %v1037 = vadd.f32 %v956, %v1036
  %v1038 = vpop.f32.mrb[0].mxu0
  %1039 = vmatprep.mubr.f32.mxu0 0.0
  %1040 = vmatmul.mubr.f32.gmra.mrb[0].mxu0 %v962
  %v1041 = vpop.f32.mrb[0].mxu0
  %v1042 = vadd.f32 %v956, %v1041
  %v1043 = vpop.f32.mrb[0].mxu0
  %1044 = vmatprep.mubr.f32.mxu0 0.0
  %1045 = vmatmul.mubr.f32.gmra.mrb[0].mxu0 %v965
  %v1046 = vpop.f32.mrb[0].mxu0
  %v1047 = vadd.f32 %v956, %v1046
  %v1048 = vpop.f32.mrb[0].mxu0
  %1049 = vmatprep.mubr.f32.mxu0 0.0
  %1050 = vmatmul.mubr.f32.gmra.mrb[0].mxu0 %v968
  %v1051 = vpop.f32.mrb[0].mxu0
  %v1052 = vadd.f32 %v956, %v1051
  %v1053 = vpop.f32.mrb[0].mxu0
  %1054 = vdwg.mxu0
  %v1055 = vtanh.pop %v1037
  %v1056 = vtanh.pop %v1042
  %v1057 = vtanh.pop %v1047
  %v1058 = vtanh.pop %v1052
  %v1059 = vxor.u32 %v1037, 2147483648
  %v1060 = vxor.u32 %v1042, 2147483648
  %v1061 = vxor.u32 %v1047, 2147483648
  %v1062 = vxor.u32 %v1052, 2147483648
  %v1063 = vmul.f32 %v1059, 1.442695
  %v1064 = vpow.pop %v1063
  %v1065 = vmul.f32 %v1060, 1.442695
  %v1066 = vpow.pop %v1065
  %v1067 = vmul.f32 %v1061, 1.442695
  %v1068 = vpow.pop %v1067
  %v1069 = vmul.f32 %v1062, 1.442695
  %v1070 = vpow.pop %v1069
  %v1071 = vadd.f32 %v1064, 1.0
  %v1072 = vadd.f32 %v1066, 1.0
  %v1073 = vadd.f32 %v1068, 1.0
  %v1074 = vadd.f32 %v1070, 1.0
  %v1075 = vrcp.pop %v1071
  %v1076 = vmul.f32 1.0, %v1075
  %v1077 = vrcp.pop %v1072
  %v1078 = vmul.f32 1.0, %v1077
  %v1079 = vrcp.pop %v1073
  %v1080 = vmul.f32 1.0, %v1079
  %v1081 = vrcp.pop %v1074
  %v1082 = vmul.f32 1.0, %v1081
  %1087 = vrot.lane.b32.xlu0 %v1076, 96
  %v1088 = vpop.permute.xlu0 %1087
  %1089 = vrot.lane.b32.xlu0 %v1078, 96
  %v1090 = vpop.permute.xlu0 %1089
  %1091 = vrot.lane.b32.xlu0 %v1080, 96
  %v1092 = vpop.permute.xlu0 %1091
  %1093 = vrot.lane.b32.xlu0 %v1082, 96
  %v1094 = vpop.permute.xlu0 %1093
  %v1099 = vmul.f32 %v1055, %v1088
  %v1100 = vmul.f32 %v1056, %v1090
  %v1101 = vmul.f32 %v1057, %v1092
  %v1102 = vmul.f32 %v1058, %v1094
  %s1103 = scalar_lea.vmem %s6, 64
  %v1104 = vld [vmem:[%s1103] sm:$0xff]
  %v1105 = vld [vmem:[%s1103 + $0x8] sm:$0xff]
  %v1106 = vld [vmem:[%s1103 + $0x10] sm:$0xff]
  %v1107 = vld [vmem:[%s1103 + $0x18] sm:$0xff]
  %s1108 = scalar_lea.vmem %s7, 2
  %v1109 = vld [vmem:[%s1108] sm:$0x1]
  %v1111 = vlaneseq
  %v1112 = vshrl.u32 %v1111, 7
  %v1113 = vsub.s32 0, %v1112
  %v1114 = vrot.slane %v1109, %v1113
  %v1117 = vsel %vm230, %v1099, 0
  %v1120 = vsel %vm230, %v1100, 0
  %v1123 = vsel %vm230, %v1101, 0
  %v1126 = vsel %vm230, %v1102, 0
  %1128 = vmatprep.subr.mxu0 0.0
  %1129 = vmatpush1.msra.mxu0 %v1104
  %1130 = vmatprep.subr.mxu0 0.0
  %1131 = vmatpush1.msra.mxu0 %v1105
  %1132 = vmatprep.subr.mxu0 0.0
  %1133 = vmatpush1.msra.mxu0 %v1106
  %1134 = vmatprep.subr.mxu0 0.0
  %1135 = vmatpush1.msra.mxu0 %v1107
  %1136 = vmatprep.subr.mxu0 0.0
  %1137 = vmatpush1.msra.mxu0 0.0
  %1138 = vmatprep.subr.mxu0 0.0
  %1139 = vmatpush1.msra.mxu0 0.0
  %1140 = vmatprep.subr.mxu0 0.0
  %1141 = vmatpush1.msra.mxu0 0.0
  %1142 = vmatprep.subr.mxu0 0.0
  %1143 = vmatpush1.msra.mxu0 0.0
  %1144 = vmatprep.subr.mxu0 0.0
  %1145 = vmatpush1.msra.mxu0 0.0
  %1146 = vmatprep.subr.mxu0 0.0
  %1147 = vmatpush1.msra.mxu0 0.0
  %1148 = vmatprep.subr.mxu0 0.0
  %1149 = vmatpush1.msra.mxu0 0.0
  %1150 = vmatprep.subr.mxu0 0.0
  %1151 = vmatpush1.msra.mxu0 0.0
  %1152 = vmatprep.subr.mxu0 0.0
  %1153 = vmatpush1.msra.mxu0 0.0
  %1154 = vmatprep.subr.mxu0 0.0
  %1155 = vmatpush1.msra.mxu0 0.0
  %1156 = vmatprep.subr.mxu0 0.0
  %1157 = vmatpush1.msra.mxu0 0.0
  %1158 = vmatprep.subr.mxu0 0.0
  %1159 = vmatpush1.msra.mxu0 0.0
  %1160 = vmatprep.subr.mxu0 0.0
  %1161 = vmatpush1.msra.mxu0 0.0
  %1162 = vmatprep.subr.mxu0 0.0
  %1163 = vmatpush1.msra.mxu0 0.0
  %1164 = vmatprep.subr.mxu0 0.0
  %1165 = vmatpush1.msra.mxu0 0.0
  %1166 = vmatprep.subr.mxu0 0.0
  %1167 = vmatpush1.msra.mxu0 0.0
  %1168 = vmatprep.subr.mxu0 0.0
  %1169 = vmatpush1.msra.mxu0 0.0
  %1170 = vmatprep.subr.mxu0 0.0
  %1171 = vmatpush1.msra.mxu0 0.0
  %1172 = vmatprep.subr.mxu0 0.0
  %1173 = vmatpush1.msra.mxu0 0.0
  %1174 = vmatprep.subr.mxu0 0.0
  %1175 = vmatpush1.msra.mxu0 0.0
  %1176 = vmatprep.subr.mxu0 0.0
  %1177 = vmatpush1.msra.mxu0 0.0
  %1178 = vmatprep.subr.mxu0 0.0
  %1179 = vmatpush1.msra.mxu0 0.0
  %1180 = vmatprep.subr.mxu0 0.0
  %1181 = vmatpush1.msra.mxu0 0.0
  %1182 = vmatprep.subr.mxu0 0.0
  %1183 = vmatpush1.msra.mxu0 0.0
  %1184 = vmatprep.subr.mxu0 0.0
  %1185 = vmatpush1.msra.mxu0 0.0
  %1186 = vmatprep.subr.mxu0 0.0
  %1187 = vmatpush1.msra.mxu0 0.0
  %1188 = vmatprep.subr.mxu0 0.0
  %1189 = vmatpush1.msra.mxu0 0.0
  %1190 = vmatprep.subr.mxu0 0.0
  %1191 = vmatpush1.msra.mxu0 0.0
  %1192 = vmatprep.mubr.f32.mxu0 0.0
  %1193 = vmatmul.mubr.f32.gmra.mrb[0].mxu0 %v1117
  %v1194 = vpop.f32.mrb[0].mxu0
  %v1195 = vadd.f32 %v1114, %v1194
  %v1196 = vpop.f32.mrb[0].mxu0
  %1197 = vmatprep.mubr.f32.mxu0 0.0
  %1198 = vmatmul.mubr.f32.gmra.mrb[0].mxu0 %v1120
  %v1199 = vpop.f32.mrb[0].mxu0
  %v1200 = vadd.f32 %v1114, %v1199
  %v1201 = vpop.f32.mrb[0].mxu0
  %1202 = vmatprep.mubr.f32.mxu0 0.0
  %1203 = vmatmul.mubr.f32.gmra.mrb[0].mxu0 %v1123
  %v1204 = vpop.f32.mrb[0].mxu0
  %v1205 = vadd.f32 %v1114, %v1204
  %v1206 = vpop.f32.mrb[0].mxu0
  %1207 = vmatprep.mubr.f32.mxu0 0.0
  %1208 = vmatmul.mubr.f32.gmra.mrb[0].mxu0 %v1126
  %v1209 = vpop.f32.mrb[0].mxu0
  %v1210 = vadd.f32 %v1114, %v1209
  %v1211 = vpop.f32.mrb[0].mxu0
  %1212 = vdwg.mxu0
  %v1213 = vadd.f32 %v861, %v1195
  %v1214 = vadd.f32 %v862, %v1200
  %v1215 = vadd.f32 %v863, %v1205
  %v1216 = vadd.f32 %v864, %v1210
  %v1217 = vadd.f32 %v869, %v1195
  %v1218 = vadd.f32 %v870, %v1200
  %v1219 = vadd.f32 %v871, %v1205
  %v1220 = vadd.f32 %v872, %v1210
  %v1221 = vmul.f32 %v1217, %v119
  %v1222 = vmul.f32 %v1218, %v124
  %v1223 = vmul.f32 %v1219, %v129
  %v1224 = vmul.f32 %v1220, %v134
  %v1225 = vrot.slane %v1221, 7
  %v1226 = vrot.slane %v1222, 7
  %v1227 = vrot.slane %v1223, 7
  %v1228 = vrot.slane %v1224, 7
  %v1229 = vsel %vm150, %v1227, %v1228
  %v1230 = vsel %vm150, %v1226, %v1227
  %v1231 = vsel %vm150, %v1225, %v1226
  %v1232 = vsel %vm150, %v1228, %v1225
  %v1233 = vmul.f32 %v1232, %v158
  %v1234 = vmul.f32 %v1231, %v163
  %v1235 = vmul.f32 %v1230, %v158
  %v1236 = vmul.f32 %v1229, %v163
  %v1237 = vrot.slane %v1221, 1
  %v1238 = vrot.slane %v1222, 1
  %v1239 = vrot.slane %v1223, 1
  %v1240 = vrot.slane %v1224, 1
  %v1241 = vsel %vm179, %v1239, %v1240
  %v1242 = vsel %vm179, %v1238, %v1239
  %v1243 = vsel %vm179, %v1237, %v1238
  %v1244 = vsel %vm179, %v1240, %v1237
  %v1245 = vmul.f32 %v1243, %v187
  %v1246 = vmul.f32 %v1242, %v192
  %v1247 = vmul.f32 %v1241, %v187
  %v1248 = vmul.f32 %v1244, %v192
  %1253 = vrot.lane.b32.xlu0 %v1221, 32
  %v1254 = vpop.permute.xlu0 %1253
  %1255 = vrot.lane.b32.xlu0 %v1222, 32
  %v1256 = vpop.permute.xlu0 %1255
  %1257 = vrot.lane.b32.xlu0 %v1223, 32
  %v1258 = vpop.permute.xlu0 %1257
  %1259 = vrot.lane.b32.xlu0 %v1224, 32
  %v1260 = vpop.permute.xlu0 %1259
  %1269 = vrot.lane.b32.xlu0 %v1245, 64
  %v1270 = vpop.permute.xlu0 %1269
  %1271 = vrot.lane.b32.xlu0 %v1246, 64
  %v1272 = vpop.permute.xlu0 %1271
  %1273 = vrot.lane.b32.xlu0 %v1247, 64
  %v1274 = vpop.permute.xlu0 %1273
  %1275 = vrot.lane.b32.xlu0 %v1248, 64
  %v1276 = vpop.permute.xlu0 %1275
  %v1281 = vsel %vm230, %v1233, %v1254
  %v1282 = vsel %vm230, %v1234, %v1256
  %v1283 = vsel %vm230, %v1235, %v1258
  %v1284 = vsel %vm230, %v1236, %v1260
  %v1285 = vsel %vm235, %v1281, %v1270
  %v1286 = vsel %vm235, %v1282, %v1272
  %v1287 = vsel %vm235, %v1283, %v1274
  %v1288 = vsel %vm235, %v1284, %v1276
  %s1289 = scalar_lea.vmem %s4, 288
  %v1290 = vld [vmem:[%s1289] sm:$0xff]
  %v1291 = vld [vmem:[%s1289 + $0x8] sm:$0xff]
  %v1292 = vld [vmem:[%s1289 + $0x10] sm:$0xff]
  %v1293 = vld [vmem:[%s1289 + $0x18] sm:$0xff]
  %v1294 = vld [vmem:[%s1289 + $0x20] sm:$0xff]
  %v1295 = vld [vmem:[%s1289 + $0x28] sm:$0xff]
  %v1296 = vld [vmem:[%s1289 + $0x30] sm:$0xff]
  %v1297 = vld [vmem:[%s1289 + $0x38] sm:$0xff]
  %v1298 = vld [vmem:[%s1289 + $0x40] sm:$0xff]
  %v1299 = vld [vmem:[%s1289 + $0x48] sm:$0xff]
  %v1300 = vld [vmem:[%s1289 + $0x50] sm:$0xff]
  %v1301 = vld [vmem:[%s1289 + $0x58] sm:$0xff]
  %s1302 = scalar_lea.vmem %s5, 3
  %v1303 = vld [vmem:[%s1302] sm:$0x1]
  %v1305 = vlaneseq
  %v1306 = vshrl.u32 %v1305, 7
  %v1307 = vsub.s32 0, %v1306
  %v1308 = vrot.slane %v1303, %v1307
  %v1311 = vsel %vm259, %v1285, 0
  %v1314 = vsel %vm259, %v1286, 0
  %v1317 = vsel %vm259, %v1287, 0
  %v1320 = vsel %vm259, %v1288, 0
  %1322 = vmatprep.subr.mxu0 0.0
  %1323 = vmatpush1.msra.mxu0 %v1290
  %1324 = vmatprep.subr.mxu0 0.0
  %1325 = vmatpush1.msra.mxu0 %v1291
  %1326 = vmatprep.subr.mxu0 0.0
  %1327 = vmatpush1.msra.mxu0 %v1292
  %1328 = vmatprep.subr.mxu0 0.0
  %1329 = vmatpush1.msra.mxu0 %v1293
  %1330 = vmatprep.subr.mxu0 0.0
  %1331 = vmatpush1.msra.mxu0 %v1294
  %1332 = vmatprep.subr.mxu0 0.0
  %1333 = vmatpush1.msra.mxu0 %v1295
  %1334 = vmatprep.subr.mxu0 0.0
  %1335 = vmatpush1.msra.mxu0 %v1296
  %1336 = vmatprep.subr.mxu0 0.0
  %1337 = vmatpush1.msra.mxu0 %v1297
  %1338 = vmatprep.subr.mxu0 0.0
  %1339 = vmatpush1.msra.mxu0 %v1298
  %1340 = vmatprep.subr.mxu0 0.0
  %1341 = vmatpush1.msra.mxu0 %v1299
  %1342 = vmatprep.subr.mxu0 0.0
  %1343 = vmatpush1.msra.mxu0 %v1300
  %1344 = vmatprep.subr.mxu0 0.0
  %1345 = vmatpush1.msra.mxu0 %v1301
  %1346 = vmatprep.subr.mxu0 0.0
  %1347 = vmatpush1.msra.mxu0 0.0
  %1348 = vmatprep.subr.mxu0 0.0
  %1349 = vmatpush1.msra.mxu0 0.0
  %1350 = vmatprep.subr.mxu0 0.0
  %1351 = vmatpush1.msra.mxu0 0.0
  %1352 = vmatprep.subr.mxu0 0.0
  %1353 = vmatpush1.msra.mxu0 0.0
  %1354 = vmatprep.subr.mxu0 0.0
  %1355 = vmatpush1.msra.mxu0 0.0
  %1356 = vmatprep.subr.mxu0 0.0
  %1357 = vmatpush1.msra.mxu0 0.0
  %1358 = vmatprep.subr.mxu0 0.0
  %1359 = vmatpush1.msra.mxu0 0.0
  %1360 = vmatprep.subr.mxu0 0.0
  %1361 = vmatpush1.msra.mxu0 0.0
  %1362 = vmatprep.subr.mxu0 0.0
  %1363 = vmatpush1.msra.mxu0 0.0
  %1364 = vmatprep.subr.mxu0 0.0
  %1365 = vmatpush1.msra.mxu0 0.0
  %1366 = vmatprep.subr.mxu0 0.0
  %1367 = vmatpush1.msra.mxu0 0.0
  %1368 = vmatprep.subr.mxu0 0.0
  %1369 = vmatpush1.msra.mxu0 0.0
  %1370 = vmatprep.subr.mxu0 0.0
  %1371 = vmatpush1.msra.mxu0 0.0
  %1372 = vmatprep.subr.mxu0 0.0
  %1373 = vmatpush1.msra.mxu0 0.0
  %1374 = vmatprep.subr.mxu0 0.0
  %1375 = vmatpush1.msra.mxu0 0.0
  %1376 = vmatprep.subr.mxu0 0.0
  %1377 = vmatpush1.msra.mxu0 0.0
  %1378 = vmatprep.subr.mxu0 0.0
  %1379 = vmatpush1.msra.mxu0 0.0
  %1380 = vmatprep.subr.mxu0 0.0
  %1381 = vmatpush1.msra.mxu0 0.0
  %1382 = vmatprep.subr.mxu0 0.0
  %1383 = vmatpush1.msra.mxu0 0.0
  %1384 = vmatprep.subr.mxu0 0.0
  %1385 = vmatpush1.msra.mxu0 0.0
  %1386 = vmatprep.mubr.f32.mxu0 0.0
  %1387 = vmatmul.mubr.f32.gmra.mrb[0].mxu0 %v1311
  %v1388 = vpop.f32.mrb[0].mxu0
  %v1389 = vadd.f32 %v1308, %v1388
  %v1390 = vpop.f32.mrb[0].mxu0
  %1391 = vmatprep.mubr.f32.mxu0 0.0
  %1392 = vmatmul.mubr.f32.gmra.mrb[0].mxu0 %v1314
  %v1393 = vpop.f32.mrb[0].mxu0
  %v1394 = vadd.f32 %v1308, %v1393
  %v1395 = vpop.f32.mrb[0].mxu0
  %1396 = vmatprep.mubr.f32.mxu0 0.0
  %1397 = vmatmul.mubr.f32.gmra.mrb[0].mxu0 %v1317
  %v1398 = vpop.f32.mrb[0].mxu0
  %v1399 = vadd.f32 %v1308, %v1398
  %v1400 = vpop.f32.mrb[0].mxu0
  %1401 = vmatprep.mubr.f32.mxu0 0.0
  %1402 = vmatmul.mubr.f32.gmra.mrb[0].mxu0 %v1320
  %v1403 = vpop.f32.mrb[0].mxu0
  %v1404 = vadd.f32 %v1308, %v1403
  %v1405 = vpop.f32.mrb[0].mxu0
  %1406 = vdwg.mxu0
  %v1407 = vtanh.pop %v1389
  %v1408 = vtanh.pop %v1394
  %v1409 = vtanh.pop %v1399
  %v1410 = vtanh.pop %v1404
  %v1411 = vxor.u32 %v1389, 2147483648
  %v1412 = vxor.u32 %v1394, 2147483648
  %v1413 = vxor.u32 %v1399, 2147483648
  %v1414 = vxor.u32 %v1404, 2147483648
  %v1415 = vmul.f32 %v1411, 1.442695
  %v1416 = vpow.pop %v1415
  %v1417 = vmul.f32 %v1412, 1.442695
  %v1418 = vpow.pop %v1417
  %v1419 = vmul.f32 %v1413, 1.442695
  %v1420 = vpow.pop %v1419
  %v1421 = vmul.f32 %v1414, 1.442695
  %v1422 = vpow.pop %v1421
  %v1423 = vadd.f32 %v1416, 1.0
  %v1424 = vadd.f32 %v1418, 1.0
  %v1425 = vadd.f32 %v1420, 1.0
  %v1426 = vadd.f32 %v1422, 1.0
  %v1427 = vrcp.pop %v1423
  %v1428 = vmul.f32 1.0, %v1427
  %v1429 = vrcp.pop %v1424
  %v1430 = vmul.f32 1.0, %v1429
  %v1431 = vrcp.pop %v1425
  %v1432 = vmul.f32 1.0, %v1431
  %v1433 = vrcp.pop %v1426
  %v1434 = vmul.f32 1.0, %v1433
  %1439 = vrot.lane.b32.xlu0 %v1428, 96
  %v1440 = vpop.permute.xlu0 %1439
  %1441 = vrot.lane.b32.xlu0 %v1430, 96
  %v1442 = vpop.permute.xlu0 %1441
  %1443 = vrot.lane.b32.xlu0 %v1432, 96
  %v1444 = vpop.permute.xlu0 %1443
  %1445 = vrot.lane.b32.xlu0 %v1434, 96
  %v1446 = vpop.permute.xlu0 %1445
  %v1451 = vmul.f32 %v1407, %v1440
  %v1452 = vmul.f32 %v1408, %v1442
  %v1453 = vmul.f32 %v1409, %v1444
  %v1454 = vmul.f32 %v1410, %v1446
  %s1455 = scalar_lea.vmem %s6, 96
  %v1456 = vld [vmem:[%s1455] sm:$0xff]
  %v1457 = vld [vmem:[%s1455 + $0x8] sm:$0xff]
  %v1458 = vld [vmem:[%s1455 + $0x10] sm:$0xff]
  %v1459 = vld [vmem:[%s1455 + $0x18] sm:$0xff]
  %s1460 = scalar_lea.vmem %s7, 3
  %v1461 = vld [vmem:[%s1460] sm:$0x1]
  %v1463 = vlaneseq
  %v1464 = vshrl.u32 %v1463, 7
  %v1465 = vsub.s32 0, %v1464
  %v1466 = vrot.slane %v1461, %v1465
  %v1469 = vsel %vm230, %v1451, 0
  %v1472 = vsel %vm230, %v1452, 0
  %v1475 = vsel %vm230, %v1453, 0
  %v1478 = vsel %vm230, %v1454, 0
  %1480 = vmatprep.subr.mxu0 0.0
  %1481 = vmatpush1.msra.mxu0 %v1456
  %1482 = vmatprep.subr.mxu0 0.0
  %1483 = vmatpush1.msra.mxu0 %v1457
  %1484 = vmatprep.subr.mxu0 0.0
  %1485 = vmatpush1.msra.mxu0 %v1458
  %1486 = vmatprep.subr.mxu0 0.0
  %1487 = vmatpush1.msra.mxu0 %v1459
  %1488 = vmatprep.subr.mxu0 0.0
  %1489 = vmatpush1.msra.mxu0 0.0
  %1490 = vmatprep.subr.mxu0 0.0
  %1491 = vmatpush1.msra.mxu0 0.0
  %1492 = vmatprep.subr.mxu0 0.0
  %1493 = vmatpush1.msra.mxu0 0.0
  %1494 = vmatprep.subr.mxu0 0.0
  %1495 = vmatpush1.msra.mxu0 0.0
  %1496 = vmatprep.subr.mxu0 0.0
  %1497 = vmatpush1.msra.mxu0 0.0
  %1498 = vmatprep.subr.mxu0 0.0
  %1499 = vmatpush1.msra.mxu0 0.0
  %1500 = vmatprep.subr.mxu0 0.0
  %1501 = vmatpush1.msra.mxu0 0.0
  %1502 = vmatprep.subr.mxu0 0.0
  %1503 = vmatpush1.msra.mxu0 0.0
  %1504 = vmatprep.subr.mxu0 0.0
  %1505 = vmatpush1.msra.mxu0 0.0
  %1506 = vmatprep.subr.mxu0 0.0
  %1507 = vmatpush1.msra.mxu0 0.0
  %1508 = vmatprep.subr.mxu0 0.0
  %1509 = vmatpush1.msra.mxu0 0.0
  %1510 = vmatprep.subr.mxu0 0.0
  %1511 = vmatpush1.msra.mxu0 0.0
  %1512 = vmatprep.subr.mxu0 0.0
  %1513 = vmatpush1.msra.mxu0 0.0
  %1514 = vmatprep.subr.mxu0 0.0
  %1515 = vmatpush1.msra.mxu0 0.0
  %1516 = vmatprep.subr.mxu0 0.0
  %1517 = vmatpush1.msra.mxu0 0.0
  %1518 = vmatprep.subr.mxu0 0.0
  %1519 = vmatpush1.msra.mxu0 0.0
  %1520 = vmatprep.subr.mxu0 0.0
  %1521 = vmatpush1.msra.mxu0 0.0
  %1522 = vmatprep.subr.mxu0 0.0
  %1523 = vmatpush1.msra.mxu0 0.0
  %1524 = vmatprep.subr.mxu0 0.0
  %1525 = vmatpush1.msra.mxu0 0.0
  %1526 = vmatprep.subr.mxu0 0.0
  %1527 = vmatpush1.msra.mxu0 0.0
  %1528 = vmatprep.subr.mxu0 0.0
  %1529 = vmatpush1.msra.mxu0 0.0
  %1530 = vmatprep.subr.mxu0 0.0
  %1531 = vmatpush1.msra.mxu0 0.0
  %1532 = vmatprep.subr.mxu0 0.0
  %1533 = vmatpush1.msra.mxu0 0.0
  %1534 = vmatprep.subr.mxu0 0.0
  %1535 = vmatpush1.msra.mxu0 0.0
  %1536 = vmatprep.subr.mxu0 0.0
  %1537 = vmatpush1.msra.mxu0 0.0
  %1538 = vmatprep.subr.mxu0 0.0
  %1539 = vmatpush1.msra.mxu0 0.0
  %1540 = vmatprep.subr.mxu0 0.0
  %1541 = vmatpush1.msra.mxu0 0.0
  %1542 = vmatprep.subr.mxu0 0.0
  %1543 = vmatpush1.msra.mxu0 0.0
  %1544 = vmatprep.mubr.f32.mxu0 0.0
  %1545 = vmatmul.mubr.f32.gmra.mrb[0].mxu0 %v1469
  %v1546 = vpop.f32.mrb[0].mxu0
  %v1547 = vadd.f32 %v1466, %v1546
  %v1548 = vpop.f32.mrb[0].mxu0
  %1549 = vmatprep.mubr.f32.mxu0 0.0
  %1550 = vmatmul.mubr.f32.gmra.mrb[0].mxu0 %v1472
  %v1551 = vpop.f32.mrb[0].mxu0
  %v1552 = vadd.f32 %v1466, %v1551
  %v1553 = vpop.f32.mrb[0].mxu0
  %1554 = vmatprep.mubr.f32.mxu0 0.0
  %1555 = vmatmul.mubr.f32.gmra.mrb[0].mxu0 %v1475
  %v1556 = vpop.f32.mrb[0].mxu0
  %v1557 = vadd.f32 %v1466, %v1556
  %v1558 = vpop.f32.mrb[0].mxu0
  %1559 = vmatprep.mubr.f32.mxu0 0.0
  %1560 = vmatmul.mubr.f32.gmra.mrb[0].mxu0 %v1478
  %v1561 = vpop.f32.mrb[0].mxu0
  %v1562 = vadd.f32 %v1466, %v1561
  %v1563 = vpop.f32.mrb[0].mxu0
  %1564 = vdwg.mxu0
  %v1565 = vadd.f32 %v1213, %v1547
  %v1566 = vadd.f32 %v1214, %v1552
  %v1567 = vadd.f32 %v1215, %v1557
  %v1568 = vadd.f32 %v1216, %v1562
  %v1569 = vmul.f32 %v1565, %v119
  %v1570 = vmul.f32 %v1566, %v124
  %v1571 = vmul.f32 %v1567, %v129
  %v1572 = vmul.f32 %v1568, %v134
  %v1573 = vld [vmem:[%s8] sm:$0xff]
  %v1574 = vld [vmem:[%s8 + $0x8] sm:$0xff]
  %v1575 = vld [vmem:[%s8 + $0x10] sm:$0xff]
  %v1576 = vld [vmem:[%s8 + $0x18] sm:$0xff]
  %v1577 = vld [vmem:[%s8 + $0x20] sm:$0xff]
  %v1578 = vld [vmem:[%s8 + $0x28] sm:$0xff]
  %v1579 = vld [vmem:[%s8 + $0x30] sm:$0xff]
  %v1580 = vld [vmem:[%s8 + $0x38] sm:$0xff]
  %v1581 = vld [vmem:[%s9] sm:$0x1]
  %v1583 = vlaneseq
  %v1584 = vshrl.u32 %v1583, 7
  %v1585 = vsub.s32 0, %v1584
  %v1586 = vrot.slane %v1581, %v1585
  %v1589 = vsel %vm235, %v1569, 0
  %v1592 = vsel %vm235, %v1570, 0
  %v1595 = vsel %vm235, %v1571, 0
  %v1598 = vsel %vm235, %v1572, 0
  %1600 = vmatprep.subr.mxu0 0.0
  %1601 = vmatpush1.msra.mxu0 %v1573
  %1602 = vmatprep.subr.mxu0 0.0
  %1603 = vmatpush1.msra.mxu0 %v1574
  %1604 = vmatprep.subr.mxu0 0.0
  %1605 = vmatpush1.msra.mxu0 %v1575
  %1606 = vmatprep.subr.mxu0 0.0
  %1607 = vmatpush1.msra.mxu0 %v1576
  %1608 = vmatprep.subr.mxu0 0.0
  %1609 = vmatpush1.msra.mxu0 %v1577
  %1610 = vmatprep.subr.mxu0 0.0
  %1611 = vmatpush1.msra.mxu0 %v1578
  %1612 = vmatprep.subr.mxu0 0.0
  %1613 = vmatpush1.msra.mxu0 %v1579
  %1614 = vmatprep.subr.mxu0 0.0
  %1615 = vmatpush1.msra.mxu0 %v1580
  %1616 = vmatprep.subr.mxu0 0.0
  %1617 = vmatpush1.msra.mxu0 0.0
  %1618 = vmatprep.subr.mxu0 0.0
  %1619 = vmatpush1.msra.mxu0 0.0
  %1620 = vmatprep.subr.mxu0 0.0
  %1621 = vmatpush1.msra.mxu0 0.0
  %1622 = vmatprep.subr.mxu0 0.0
  %1623 = vmatpush1.msra.mxu0 0.0
  %1624 = vmatprep.subr.mxu0 0.0
  %1625 = vmatpush1.msra.mxu0 0.0
  %1626 = vmatprep.subr.mxu0 0.0
  %1627 = vmatpush1.msra.mxu0 0.0
  %1628 = vmatprep.subr.mxu0 0.0
  %1629 = vmatpush1.msra.mxu0 0.0
  %1630 = vmatprep.subr.mxu0 0.0
  %1631 = vmatpush1.msra.mxu0 0.0
  %1632 = vmatprep.subr.mxu0 0.0
  %1633 = vmatpush1.msra.mxu0 0.0
  %1634 = vmatprep.subr.mxu0 0.0
  %1635 = vmatpush1.msra.mxu0 0.0
  %1636 = vmatprep.subr.mxu0 0.0
  %1637 = vmatpush1.msra.mxu0 0.0
  %1638 = vmatprep.subr.mxu0 0.0
  %1639 = vmatpush1.msra.mxu0 0.0
  %1640 = vmatprep.subr.mxu0 0.0
  %1641 = vmatpush1.msra.mxu0 0.0
  %1642 = vmatprep.subr.mxu0 0.0
  %1643 = vmatpush1.msra.mxu0 0.0
  %1644 = vmatprep.subr.mxu0 0.0
  %1645 = vmatpush1.msra.mxu0 0.0
  %1646 = vmatprep.subr.mxu0 0.0
  %1647 = vmatpush1.msra.mxu0 0.0
  %1648 = vmatprep.subr.mxu0 0.0
  %1649 = vmatpush1.msra.mxu0 0.0
  %1650 = vmatprep.subr.mxu0 0.0
  %1651 = vmatpush1.msra.mxu0 0.0
  %1652 = vmatprep.subr.mxu0 0.0
  %1653 = vmatpush1.msra.mxu0 0.0
  %1654 = vmatprep.subr.mxu0 0.0
  %1655 = vmatpush1.msra.mxu0 0.0
  %1656 = vmatprep.subr.mxu0 0.0
  %1657 = vmatpush1.msra.mxu0 0.0
  %1658 = vmatprep.subr.mxu0 0.0
  %1659 = vmatpush1.msra.mxu0 0.0
  %1660 = vmatprep.subr.mxu0 0.0
  %1661 = vmatpush1.msra.mxu0 0.0
  %1662 = vmatprep.subr.mxu0 0.0
  %1663 = vmatpush1.msra.mxu0 0.0
  %1664 = vmatprep.mubr.f32.mxu0 0.0
  %1665 = vmatmul.mubr.f32.gmra.mrb[0].mxu0 %v1589
  %v1666 = vpop.f32.mrb[0].mxu0
  %v1667 = vadd.f32 %v1586, %v1666
  %v1668 = vpop.f32.mrb[0].mxu0
  %1669 = vmatprep.mubr.f32.mxu0 0.0
  %1670 = vmatmul.mubr.f32.gmra.mrb[0].mxu0 %v1592
  %v1671 = vpop.f32.mrb[0].mxu0
  %v1672 = vadd.f32 %v1586, %v1671
  %v1673 = vpop.f32.mrb[0].mxu0
  %1674 = vmatprep.mubr.f32.mxu0 0.0
  %1675 = vmatmul.mubr.f32.gmra.mrb[0].mxu0 %v1595
  %v1676 = vpop.f32.mrb[0].mxu0
  %v1677 = vadd.f32 %v1586, %v1676
  %v1678 = vpop.f32.mrb[0].mxu0
  %1679 = vmatprep.mubr.f32.mxu0 0.0
  %1680 = vmatmul.mubr.f32.gmra.mrb[0].mxu0 %v1598
  %v1681 = vpop.f32.mrb[0].mxu0
  %v1682 = vadd.f32 %v1586, %v1681
  %v1683 = vpop.f32.mrb[0].mxu0
  %1684 = vdwg.mxu0
  %v1685 = vmul.f32 %v1667, %v119
  %v1686 = vmul.f32 %v1672, %v124
  %v1687 = vmul.f32 %v1677, %v129
  %v1688 = vmul.f32 %v1682, %v134
  %v1689 = vlaneseq
  %v1690 = vand.u32 %v1689, 127
  %vm1691 = vcmp.ge.s32.totalorder %v1690, 2
  %v1692 = vsel %vm1691, %v1685, 0.0
  %v1693 = vsel %vm1691, %v1686, 0.0
  %v1694 = vsel %vm1691, %v1687, 0.0
  %v1695 = vsel %vm1691, %v1688, 0.0
  %v1696 = vmul.f32 %v1692, 1.442695
  %v1697 = vpow.pop %v1696
  %v1698 = vmul.f32 %v1693, 1.442695
  %v1699 = vpow.pop %v1698
  %v1700 = vmul.f32 %v1694, 1.442695
  %v1701 = vpow.pop %v1700
  %v1702 = vmul.f32 %v1695, 1.442695
  %v1703 = vpow.pop %v1702
  %v1704 = vmul.f32 %v37, %v1697
  %v1705 = vmul.f32 %v38, %v1699
  %v1706 = vmul.f32 %v39, %v1701
  %v1707 = vmul.f32 %v40, %v1703
  %v1708 = vmul.f32 %v1704, %v119
  %v1709 = vmul.f32 %v1705, %v124
  %v1710 = vmul.f32 %v1706, %v129
  %v1711 = vmul.f32 %v1707, %v134
  %1716 = vrot.lane.b32.xlu0 %v1708, 4
  %v1717 = vpop.permute.xlu0 %1716
  %1718 = vrot.lane.b32.xlu0 %v1709, 4
  %v1719 = vpop.permute.xlu0 %1718
  %1720 = vrot.lane.b32.xlu0 %v1710, 4
  %v1721 = vpop.permute.xlu0 %1720
  %1722 = vrot.lane.b32.xlu0 %v1711, 4
  %v1723 = vpop.permute.xlu0 %1722
  %v1728 = vadd.f32 %v1685, %v1717
  %v1729 = vadd.f32 %v1686, %v1719
  %v1730 = vadd.f32 %v1687, %v1721
  %v1731 = vadd.f32 %v1688, %v1723
  %1736 = vrot.lane.b32.xlu0 %v1728, 124
  %v1737 = vpop.permute.xlu0 %1736
  %1738 = vrot.lane.b32.xlu0 %v1729, 124
  %v1739 = vpop.permute.xlu0 %1738
  %1740 = vrot.lane.b32.xlu0 %v1730, 124
  %v1741 = vpop.permute.xlu0 %1740
  %1742 = vrot.lane.b32.xlu0 %v1731, 124
  %v1743 = vpop.permute.xlu0 %1742
  %v1748 = vsel %vm1691, %v1737, %v37
  %v1749 = vsel %vm1691, %v1739, %v38
  %v1750 = vsel %vm1691, %v1741, %v39
  %v1751 = vsel %vm1691, %v1743, %v40
  %vm1752 = vcmask 31744
  %1753 = vst.msk [vmem:[%s10] sm:$0xff] %vm1752, %v1748
  %1754 = vst.msk [vmem:[%s10 + $0x8] sm:$0xff] %vm1752, %v1749
  %1755 = vst.msk [vmem:[%s10 + $0x10] sm:$0xff] %vm1752, %v1750
  %1756 = vst.msk [vmem:[%s10 + $0x18] sm:$0xff] %vm1752, %v1751
  %v1757 = vsel %vm1752, %v1692, 0.0
  %1758 = vadd.xlane.f32.xlu0 %v1757
  %v1759 = vpop.xlane.xlu0 %1758
  %v1760 = vsel %vm1752, %v1693, 0.0
  %1761 = vadd.xlane.f32.xlu0 %v1760
  %v1762 = vpop.xlane.xlu0 %1761
  %v1763 = vadd.f32 %v1759, %v1762
  %v1764 = vrot.slane %v1763, 4
  %v1765 = vadd.f32 %v1763, %v1764
  %v1766 = vrot.slane %v1765, 2
  %v1767 = vadd.f32 %v1765, %v1766
  %v1768 = vrot.slane %v1767, 1
  %v1769 = vadd.f32 %v1767, %v1768
  %vm1770 = vcmask 0
  %1771 = vst.msk [vmem:[%s11] sm:$0x1] %vm1770, %v1769
  %v1772 = vsel %vm1752, %v1694, 0.0
  %1773 = vadd.xlane.f32.xlu0 %v1772
  %v1774 = vpop.xlane.xlu0 %1773
  %v1775 = vsel %vm1752, %v1695, 0.0
  %1776 = vadd.xlane.f32.xlu0 %v1775
  %v1777 = vpop.xlane.xlu0 %1776
  %v1778 = vadd.f32 %v1774, %v1777
  %v1779 = vrot.slane %v1778, 4
  %v1780 = vadd.f32 %v1778, %v1779
  %v1781 = vrot.slane %v1780, 2
  %v1782 = vadd.f32 %v1780, %v1781
  %v1783 = vrot.slane %v1782, 1
  %v1784 = vadd.f32 %v1782, %v1783
  %s1785 = scalar_lea.vmem %s11, 1
  %1786 = vst.msk [vmem:[%s1785] sm:$0x1] %vm1770, %v1784
  // Predicated region
  $region42: #{_coupling_forward_jit.1} parent=0 // pred_check
    _
  $region43: #{_coupling_forward_jit.1} parent=0 // pred_check_branch
    %1788 = sbr.rel (0) target = $region45
  $region44: #{_coupling_forward_jit.1} parent=0 // pred_region
    _
  $region45: #{_coupling_forward_jit.1} parent=0 // pred_fallthru
    _
  // Predicated region
  $region46: #{_coupling_forward_jit.1} parent=0 // pred_check
    _
  $region47: #{_coupling_forward_jit.1} parent=0 // pred_check_branch
    %1790 = sbr.rel (0) target = $region49
  $region48: #{_coupling_forward_jit.1} parent=0 // pred_region
    _
  $region49: #{_coupling_forward_jit.1} parent=0 // pred_fallthru
    _
  // Predicated region
  $region50: #{_coupling_forward_jit.1} parent=0 // pred_check
    _
  $region51: #{_coupling_forward_jit.1} parent=0 // pred_check_branch
    %1792 = sbr.rel (0) target = $region53
  $region52: #{_coupling_forward_jit.1} parent=0 // pred_region
    _
  $region53: #{_coupling_forward_jit.1} parent=0 // pred_fallthru
    _
  // Predicated region
  $region54: #{_coupling_forward_jit.1} parent=0 // pred_check
    _
  $region55: #{_coupling_forward_jit.1} parent=0 // pred_check_branch
    %1794 = sbr.rel (0) target = $region57
  $region56: #{_coupling_forward_jit.1} parent=0 // pred_region
    _
  $region57: #{_coupling_forward_jit.1} parent=0 // pred_fallthru
    _

</llo_original>
